<compile_context>
chip_gen: v5e
topology: v5e:2x2
jax: 0.10.0
libtpu: 0.0.40
codegen_flags: <defaults>
</compile_context>

<pallas_src>
import jax
import jax.numpy as jnp
import numpy as np
from jax.experimental import pallas as pl
from jax.experimental.pallas import tpu as pltpu

_GB = 128  # per-gate lane block (one vreg lane width)


def _encoder_kernel(xt_ref, wih_ref, whh_ref, bias_ref, w1_ref, w2_ref, out_ref):
    S, B, D = xt_ref.shape
    GB = _GB
    H = w2_ref.shape[0]
    O = out_ref.shape[1]

    # ---- unpack the single bias slab (all static slices, off the serial path) ----
    bias = bias_ref[...]                              # (4, 3*GB)
    gi_bias = bias[0:1, :]                            # combined b_ih(+b_hh for r/z)
    b_hn = jnp.broadcast_to(bias[1:2, 2 * GB:3 * GB], (B, GB))   # hoisted broadcast
    b1 = bias[2:3, 0:H]
    b2 = bias[3:4, 0:O]

    # ---- hoisted input projection: one fused MXU op + one bias add ----
    x_flat = xt_ref[...].reshape(S * B, D)            # time-major rows
    gi = (jnp.dot(x_flat, wih_ref[...], preferred_element_type=jnp.float32)
          + gi_bias).reshape(S, B, 3 * GB)            # (S, B, 3*GB), gate-per-128-lanes

    whh = whh_ref[...]                                # (GB, 3*GB), zero-padded

    # Hidden state lives in one padded 128-lane block; pad lanes stay exactly 0.
    h = jnp.zeros((B, GB), jnp.float32)

    # Time-reversed recurrence (original time indices S-1 ... 0), fully unrolled.
    for step in range(S):
        t = S - 1 - step
        # single MXU push per step for all three gates
        hg = jnp.dot(h, whh, preferred_element_type=jnp.float32)   # (B, 3*GB)
        g = gi[t]                                     # leading-dim slice: free
        r = jax.nn.sigmoid(g[:, 0:GB] + hg[:, 0:GB])
        z = jax.nn.sigmoid(g[:, GB:2 * GB] + hg[:, GB:2 * GB])
        n = jnp.tanh(g[:, 2 * GB:3 * GB] + r * (hg[:, 2 * GB:3 * GB] + b_hn))
        h = n + z * (h - n)                           # == (1-z)*n + z*h

    # hiddens_to_output: Linear -> ReLU -> Linear on the final GRU hidden state.
    y1 = jnp.dot(h, w1_ref[...], preferred_element_type=jnp.float32) + b1
    y1 = jnp.maximum(y1, 0.0)
    y2 = jnp.dot(y1, w2_ref[...], preferred_element_type=jnp.float32) + b2
    out_ref[...] = y2.astype(out_ref.dtype)           # (B, O); lane-sparse but tiny


def encoder_forward(data, params, *, hidden_dim, output_dim):
    """data: (batch, seq, input_dim) float32. Returns (batch, output_dim)."""
    B, S, D = data.shape
    H, O, GB = hidden_dim, output_dim, _GB
    assert H <= GB, "this packing scheme assumes hidden_dim <= 128"
    assert O <= 3 * GB

    w_ih, w_hh = params["w_ih"], params["w_hh"]       # (3H, D), (3H, H)
    b_ih, b_hh = params["b_ih"], params["b_hh"]       # (3H,),  (3H,)

    # --- pack GRU weights: each gate (PyTorch order r, z, n) gets its own
    # --- 128-lane block; hidden contraction dim zero-padded to 128 rows.
    wih_pack = jnp.zeros((D, 3 * GB), jnp.float32)
    whh_pack = jnp.zeros((GB, 3 * GB), jnp.float32)
    for g in range(3):
        wih_pack = wih_pack.at[:, g * GB:g * GB + H].set(w_ih[g * H:(g + 1) * H, :].T)
        whh_pack = whh_pack.at[:H, g * GB:g * GB + H].set(w_hh[g * H:(g + 1) * H, :].T)

    # --- one bias slab: row0 = combined input-side gate biases (r/z pre-summed
    # --- with the hidden-side bias; legal), row1 = b_hn (must stay inside the
    # --- r*(.) term), row2 = b1, row3 = b2.
    bias_pack = jnp.zeros((4, 3 * GB), jnp.float32)
    bias_pack = bias_pack.at[0, 0 * GB:0 * GB + H].set(b_ih[0:H] + b_hh[0:H])
    bias_pack = bias_pack.at[0, 1 * GB:1 * GB + H].set(b_ih[H:2 * H] + b_hh[H:2 * H])
    bias_pack = bias_pack.at[0, 2 * GB:2 * GB + H].set(b_ih[2 * H:3 * H])
    bias_pack = bias_pack.at[1, 2 * GB:2 * GB + H].set(b_hh[2 * H:3 * H])
    bias_pack = bias_pack.at[2, 0:H].set(params["b1"])
    bias_pack = bias_pack.at[3, 0:O].set(params["b2"])

    # --- MLP head weights; w1 rows zero-padded to the 128-lane hidden block.
    w1_pack = jnp.zeros((GB, H), jnp.float32).at[:H, :].set(params["w1"].T)
    w2_t = params["w2"].T                              # (H, O)

    # Time-major input (one tiny wrapper-side copy); time reversal is handled
    # by the kernel's iteration order.
    xt = jnp.transpose(data, (1, 0, 2))                # (S, B, D)

    vmem = pl.BlockSpec(memory_space=pltpu.MemorySpace.VMEM)
    return pl.pallas_call(
        _encoder_kernel,
        out_shape=jax.ShapeDtypeStruct((B, O), jnp.float32),
        in_specs=[vmem] * 6,
        out_specs=pl.BlockSpec(memory_space=pltpu.MemorySpace.VMEM),
    )(xt, wih_pack, whh_pack, bias_pack, w1_pack, w2_t)


def encoder_reference(data, params, *, hidden_dim, output_dim):
    """Pure-JAX reference of the same math (sanity check)."""
    H = hidden_dim
    x = jnp.transpose(data, (1, 0, 2))[::-1]
    B = x.shape[1]

    def step(h, xt):
        gi = xt @ params["w_ih"].T + params["b_ih"]
        gh = h @ params["w_hh"].T + params["b_hh"]
        i_r, i_z, i_n = gi[:, :H], gi[:, H:2 * H], gi[:, 2 * H:]
        h_r, h_z, h_n = gh[:, :H], gh[:, H:2 * H], gh[:, 2 * H:]
        r = jax.nn.sigmoid(i_r + h_r)
        z = jax.nn.sigmoid(i_z + h_z)
        n = jnp.tanh(i_n + r * h_n)
        h_new = (1.0 - z) * n + z * h
        return h_new, None

    h0 = jnp.zeros((B, H), jnp.float32)
    h_last, _ = jax.lax.scan(step, h0, x)
    y1 = jnp.maximum(h_last @ params["w1"].T + params["b1"], 0.0)
    return y1 @ params["w2"].T + params["b2"]


def make_params(key, input_dim, hidden_dim, output_dim):
    """Deterministic synthetic init matching the module's __init__ shapes.
    GRU: PyTorch default uniform(-1/sqrt(H), 1/sqrt(H)).
    MLP: utils.init_network_weights -> normal(std=0.001) weights, zero biases."""
    H, D, O = hidden_dim, input_dim, output_dim
    ks = jax.random.split(key, 6)
    bound = 1.0 / np.sqrt(H)
    u = lambda k, shape: jax.random.uniform(k, shape, jnp.float32, -bound, bound)
    return {
        "w_ih": u(ks[0], (3 * H, D)),
        "w_hh": u(ks[1], (3 * H, H)),
        "b_ih": u(ks[2], (3 * H,)),
        "b_hh": u(ks[3], (3 * H,)),
        "w1": 0.001 * jax.random.normal(ks[4], (H, H), jnp.float32),
        "b1": jnp.zeros((H,), jnp.float32),
        "w2": 0.001 * jax.random.normal(ks[5], (O, H), jnp.float32),
        "b2": jnp.zeros((O,), jnp.float32),
    }


if __name__ == "__main__":
    batch, seq, input_dim, hidden_dim, output_dim = 2, 8, 4, 32, 8

    key = jax.random.PRNGKey(0)
    k_data, k_params = jax.random.split(key)
    data = jax.random.normal(k_data, (batch, seq, input_dim), jnp.float32)
    params = make_params(k_params, input_dim, hidden_dim, output_dim)

    out = encoder_forward(data, params, hidden_dim=hidden_dim, output_dim=output_dim)
    out = jax.block_until_ready(out)

    ref = encoder_reference(data, params, hidden_dim=hidden_dim, output_dim=output_dim)
    np.testing.assert_allclose(np.asarray(out), np.asarray(ref), rtol=1e-5, atol=1e-5)

    assert out.shape == (batch, output_dim)
    print("KERNEL_OK")
</pallas_src>

<mosaic_0001>
module attributes {stable_mosaic.version = 11 : i64} {
  func.func @_encoder_kernel(%arg0: memref<8x2x4xf32, #tpu.memory_space<vmem>>, %arg1: memref<4x384xf32, #tpu.memory_space<vmem>>, %arg2: memref<128x384xf32, #tpu.memory_space<vmem>>, %arg3: memref<4x384xf32, #tpu.memory_space<vmem>>, %arg4: memref<128x32xf32, #tpu.memory_space<vmem>>, %arg5: memref<32x8xf32, #tpu.memory_space<vmem>>, %arg6: memref<2x8xf32, #tpu.memory_space<vmem>>) attributes {dimension_semantics = [], scalar_prefetch = 0 : i64, scratch_operands = 0 : i64, tpu.core_type = #tpu.core_type<tc>} {
    %c0 = arith.constant 0 : index
    %c0_0 = arith.constant 0 : index
    %0 = vector.load %arg3[%c0, %c0_0] : memref<4x384xf32, #tpu.memory_space<vmem>>, vector<4x384xf32>
    %1 = vector.extract_strided_slice %0 {offsets = [0, 0], sizes = [1, 384], strides = [1, 1]} : vector<4x384xf32> to vector<1x384xf32>
    %2 = vector.extract_strided_slice %0 {offsets = [1, 256], sizes = [1, 128], strides = [1, 1]} : vector<4x384xf32> to vector<1x128xf32>
    %3 = vector.shape_cast %2 : vector<1x128xf32> to vector<1x128xf32>
    %4 = vector.broadcast %3 : vector<1x128xf32> to vector<2x128xf32>
    %5 = vector.extract_strided_slice %0 {offsets = [2, 0], sizes = [1, 32], strides = [1, 1]} : vector<4x384xf32> to vector<1x32xf32>
    %6 = vector.extract_strided_slice %0 {offsets = [3, 0], sizes = [1, 8], strides = [1, 1]} : vector<4x384xf32> to vector<1x8xf32>
    %c0_1 = arith.constant 0 : index
    %c0_2 = arith.constant 0 : index
    %c0_3 = arith.constant 0 : index
    %7 = vector.load %arg0[%c0_1, %c0_2, %c0_3] : memref<8x2x4xf32, #tpu.memory_space<vmem>>, vector<8x2x4xf32>
    %8 = vector.shape_cast %7 : vector<8x2x4xf32> to vector<16x4xf32>
    %c0_4 = arith.constant 0 : index
    %c0_5 = arith.constant 0 : index
    %9 = vector.load %arg1[%c0_4, %c0_5] : memref<4x384xf32, #tpu.memory_space<vmem>>, vector<4x384xf32>
    %cst = arith.constant dense<0.000000e+00> : vector<16x384xf32>
    %10 = tpu.matmul %8, %9, %cst {dimension_numbers = #tpu.dot_dimension_numbers<[1], [0], [0], [1], [0, 0, 1, 1], [], []>} : vector<16x4xf32>, vector<4x384xf32>, vector<16x384xf32> -> vector<16x384xf32>
    %11 = vector.broadcast %1 : vector<1x384xf32> to vector<16x384xf32>
    %12 = arith.addf %10, %11 : vector<16x384xf32>
    %13 = vector.shape_cast %12 : vector<16x384xf32> to vector<8x2x384xf32>
    %c0_6 = arith.constant 0 : index
    %c0_7 = arith.constant 0 : index
    %14 = vector.load %arg2[%c0_6, %c0_7] : memref<128x384xf32, #tpu.memory_space<vmem>>, vector<128x384xf32>
    %cst_8 = arith.constant 0.000000e+00 : f32
    %15 = vector.broadcast %cst_8 : f32 to vector<2x128xf32>
    %cst_9 = arith.constant dense<0.000000e+00> : vector<2x384xf32>
    %16 = tpu.matmul %15, %14, %cst_9 {dimension_numbers = #tpu.dot_dimension_numbers<[1], [0], [0], [1], [0, 0, 1, 1], [], []>} : vector<2x128xf32>, vector<128x384xf32>, vector<2x384xf32> -> vector<2x384xf32>
    %17 = vector.extract_strided_slice %13 {offsets = [7, 0, 0], sizes = [1, 2, 384], strides = [1, 1, 1]} : vector<8x2x384xf32> to vector<1x2x384xf32>
    %18 = vector.shape_cast %17 : vector<1x2x384xf32> to vector<2x384xf32>
    %19 = vector.extract_strided_slice %18 {offsets = [0, 0], sizes = [2, 128], strides = [1, 1]} : vector<2x384xf32> to vector<2x128xf32>
    %20 = vector.extract_strided_slice %16 {offsets = [0, 0], sizes = [2, 128], strides = [1, 1]} : vector<2x384xf32> to vector<2x128xf32>
    %21 = arith.addf %19, %20 : vector<2x128xf32>
    %22 = arith.negf %21 : vector<2x128xf32>
    %23 = math.exp %22 : vector<2x128xf32>
    %cst_10 = arith.constant 1.000000e+00 : f32
    %24 = vector.broadcast %cst_10 : f32 to vector<2x128xf32>
    %25 = arith.addf %24, %23 : vector<2x128xf32>
    %26 = arith.divf %24, %25 : vector<2x128xf32>
    %27 = vector.extract_strided_slice %18 {offsets = [0, 128], sizes = [2, 128], strides = [1, 1]} : vector<2x384xf32> to vector<2x128xf32>
    %28 = vector.extract_strided_slice %16 {offsets = [0, 128], sizes = [2, 128], strides = [1, 1]} : vector<2x384xf32> to vector<2x128xf32>
    %29 = arith.addf %27, %28 : vector<2x128xf32>
    %30 = arith.negf %29 : vector<2x128xf32>
    %31 = math.exp %30 : vector<2x128xf32>
    %cst_11 = arith.constant 1.000000e+00 : f32
    %32 = vector.broadcast %cst_11 : f32 to vector<2x128xf32>
    %33 = arith.addf %32, %31 : vector<2x128xf32>
    %34 = arith.divf %32, %33 : vector<2x128xf32>
    %35 = vector.extract_strided_slice %18 {offsets = [0, 256], sizes = [2, 128], strides = [1, 1]} : vector<2x384xf32> to vector<2x128xf32>
    %36 = vector.extract_strided_slice %16 {offsets = [0, 256], sizes = [2, 128], strides = [1, 1]} : vector<2x384xf32> to vector<2x128xf32>
    %37 = arith.addf %36, %4 : vector<2x128xf32>
    %38 = arith.mulf %26, %37 : vector<2x128xf32>
    %39 = arith.addf %35, %38 : vector<2x128xf32>
    %40 = math.tanh %39 : vector<2x128xf32>
    %41 = arith.subf %15, %40 : vector<2x128xf32>
    %42 = arith.mulf %34, %41 : vector<2x128xf32>
    %43 = arith.addf %40, %42 : vector<2x128xf32>
    %cst_12 = arith.constant dense<0.000000e+00> : vector<2x384xf32>
    %44 = tpu.matmul %43, %14, %cst_12 {dimension_numbers = #tpu.dot_dimension_numbers<[1], [0], [0], [1], [0, 0, 1, 1], [], []>} : vector<2x128xf32>, vector<128x384xf32>, vector<2x384xf32> -> vector<2x384xf32>
    %45 = vector.extract_strided_slice %13 {offsets = [6, 0, 0], sizes = [1, 2, 384], strides = [1, 1, 1]} : vector<8x2x384xf32> to vector<1x2x384xf32>
    %46 = vector.shape_cast %45 : vector<1x2x384xf32> to vector<2x384xf32>
    %47 = vector.extract_strided_slice %46 {offsets = [0, 0], sizes = [2, 128], strides = [1, 1]} : vector<2x384xf32> to vector<2x128xf32>
    %48 = vector.extract_strided_slice %44 {offsets = [0, 0], sizes = [2, 128], strides = [1, 1]} : vector<2x384xf32> to vector<2x128xf32>
    %49 = arith.addf %47, %48 : vector<2x128xf32>
    %50 = arith.negf %49 : vector<2x128xf32>
    %51 = math.exp %50 : vector<2x128xf32>
    %cst_13 = arith.constant 1.000000e+00 : f32
    %52 = vector.broadcast %cst_13 : f32 to vector<2x128xf32>
    %53 = arith.addf %52, %51 : vector<2x128xf32>
    %54 = arith.divf %52, %53 : vector<2x128xf32>
    %55 = vector.extract_strided_slice %46 {offsets = [0, 128], sizes = [2, 128], strides = [1, 1]} : vector<2x384xf32> to vector<2x128xf32>
    %56 = vector.extract_strided_slice %44 {offsets = [0, 128], sizes = [2, 128], strides = [1, 1]} : vector<2x384xf32> to vector<2x128xf32>
    %57 = arith.addf %55, %56 : vector<2x128xf32>
    %58 = arith.negf %57 : vector<2x128xf32>
    %59 = math.exp %58 : vector<2x128xf32>
    %cst_14 = arith.constant 1.000000e+00 : f32
    %60 = vector.broadcast %cst_14 : f32 to vector<2x128xf32>
    %61 = arith.addf %60, %59 : vector<2x128xf32>
    %62 = arith.divf %60, %61 : vector<2x128xf32>
    %63 = vector.extract_strided_slice %46 {offsets = [0, 256], sizes = [2, 128], strides = [1, 1]} : vector<2x384xf32> to vector<2x128xf32>
    %64 = vector.extract_strided_slice %44 {offsets = [0, 256], sizes = [2, 128], strides = [1, 1]} : vector<2x384xf32> to vector<2x128xf32>
    %65 = arith.addf %64, %4 : vector<2x128xf32>
    %66 = arith.mulf %54, %65 : vector<2x128xf32>
    %67 = arith.addf %63, %66 : vector<2x128xf32>
    %68 = math.tanh %67 : vector<2x128xf32>
    %69 = arith.subf %43, %68 : vector<2x128xf32>
    %70 = arith.mulf %62, %69 : vector<2x128xf32>
    %71 = arith.addf %68, %70 : vector<2x128xf32>
    %cst_15 = arith.constant dense<0.000000e+00> : vector<2x384xf32>
    %72 = tpu.matmul %71, %14, %cst_15 {dimension_numbers = #tpu.dot_dimension_numbers<[1], [0], [0], [1], [0, 0, 1, 1], [], []>} : vector<2x128xf32>, vector<128x384xf32>, vector<2x384xf32> -> vector<2x384xf32>
    %73 = vector.extract_strided_slice %13 {offsets = [5, 0, 0], sizes = [1, 2, 384], strides = [1, 1, 1]} : vector<8x2x384xf32> to vector<1x2x384xf32>
    %74 = vector.shape_cast %73 : vector<1x2x384xf32> to vector<2x384xf32>
    %75 = vector.extract_strided_slice %74 {offsets = [0, 0], sizes = [2, 128], strides = [1, 1]} : vector<2x384xf32> to vector<2x128xf32>
    %76 = vector.extract_strided_slice %72 {offsets = [0, 0], sizes = [2, 128], strides = [1, 1]} : vector<2x384xf32> to vector<2x128xf32>
    %77 = arith.addf %75, %76 : vector<2x128xf32>
    %78 = arith.negf %77 : vector<2x128xf32>
    %79 = math.exp %78 : vector<2x128xf32>
    %cst_16 = arith.constant 1.000000e+00 : f32
    %80 = vector.broadcast %cst_16 : f32 to vector<2x128xf32>
    %81 = arith.addf %80, %79 : vector<2x128xf32>
    %82 = arith.divf %80, %81 : vector<2x128xf32>
    %83 = vector.extract_strided_slice %74 {offsets = [0, 128], sizes = [2, 128], strides = [1, 1]} : vector<2x384xf32> to vector<2x128xf32>
    %84 = vector.extract_strided_slice %72 {offsets = [0, 128], sizes = [2, 128], strides = [1, 1]} : vector<2x384xf32> to vector<2x128xf32>
    %85 = arith.addf %83, %84 : vector<2x128xf32>
    %86 = arith.negf %85 : vector<2x128xf32>
    %87 = math.exp %86 : vector<2x128xf32>
    %cst_17 = arith.constant 1.000000e+00 : f32
    %88 = vector.broadcast %cst_17 : f32 to vector<2x128xf32>
    %89 = arith.addf %88, %87 : vector<2x128xf32>
    %90 = arith.divf %88, %89 : vector<2x128xf32>
    %91 = vector.extract_strided_slice %74 {offsets = [0, 256], sizes = [2, 128], strides = [1, 1]} : vector<2x384xf32> to vector<2x128xf32>
    %92 = vector.extract_strided_slice %72 {offsets = [0, 256], sizes = [2, 128], strides = [1, 1]} : vector<2x384xf32> to vector<2x128xf32>
    %93 = arith.addf %92, %4 : vector<2x128xf32>
    %94 = arith.mulf %82, %93 : vector<2x128xf32>
    %95 = arith.addf %91, %94 : vector<2x128xf32>
    %96 = math.tanh %95 : vector<2x128xf32>
    %97 = arith.subf %71, %96 : vector<2x128xf32>
    %98 = arith.mulf %90, %97 : vector<2x128xf32>
    %99 = arith.addf %96, %98 : vector<2x128xf32>
    %cst_18 = arith.constant dense<0.000000e+00> : vector<2x384xf32>
    %100 = tpu.matmul %99, %14, %cst_18 {dimension_numbers = #tpu.dot_dimension_numbers<[1], [0], [0], [1], [0, 0, 1, 1], [], []>} : vector<2x128xf32>, vector<128x384xf32>, vector<2x384xf32> -> vector<2x384xf32>
    %101 = vector.extract_strided_slice %13 {offsets = [4, 0, 0], sizes = [1, 2, 384], strides = [1, 1, 1]} : vector<8x2x384xf32> to vector<1x2x384xf32>
    %102 = vector.shape_cast %101 : vector<1x2x384xf32> to vector<2x384xf32>
    %103 = vector.extract_strided_slice %102 {offsets = [0, 0], sizes = [2, 128], strides = [1, 1]} : vector<2x384xf32> to vector<2x128xf32>
    %104 = vector.extract_strided_slice %100 {offsets = [0, 0], sizes = [2, 128], strides = [1, 1]} : vector<2x384xf32> to vector<2x128xf32>
    %105 = arith.addf %103, %104 : vector<2x128xf32>
    %106 = arith.negf %105 : vector<2x128xf32>
    %107 = math.exp %106 : vector<2x128xf32>
    %cst_19 = arith.constant 1.000000e+00 : f32
    %108 = vector.broadcast %cst_19 : f32 to vector<2x128xf32>
    %109 = arith.addf %108, %107 : vector<2x128xf32>
    %110 = arith.divf %108, %109 : vector<2x128xf32>
    %111 = vector.extract_strided_slice %102 {offsets = [0, 128], sizes = [2, 128], strides = [1, 1]} : vector<2x384xf32> to vector<2x128xf32>
    %112 = vector.extract_strided_slice %100 {offsets = [0, 128], sizes = [2, 128], strides = [1, 1]} : vector<2x384xf32> to vector<2x128xf32>
    %113 = arith.addf %111, %112 : vector<2x128xf32>
    %114 = arith.negf %113 : vector<2x128xf32>
    %115 = math.exp %114 : vector<2x128xf32>
    %cst_20 = arith.constant 1.000000e+00 : f32
    %116 = vector.broadcast %cst_20 : f32 to vector<2x128xf32>
    %117 = arith.addf %116, %115 : vector<2x128xf32>
    %118 = arith.divf %116, %117 : vector<2x128xf32>
    %119 = vector.extract_strided_slice %102 {offsets = [0, 256], sizes = [2, 128], strides = [1, 1]} : vector<2x384xf32> to vector<2x128xf32>
    %120 = vector.extract_strided_slice %100 {offsets = [0, 256], sizes = [2, 128], strides = [1, 1]} : vector<2x384xf32> to vector<2x128xf32>
    %121 = arith.addf %120, %4 : vector<2x128xf32>
    %122 = arith.mulf %110, %121 : vector<2x128xf32>
    %123 = arith.addf %119, %122 : vector<2x128xf32>
    %124 = math.tanh %123 : vector<2x128xf32>
    %125 = arith.subf %99, %124 : vector<2x128xf32>
    %126 = arith.mulf %118, %125 : vector<2x128xf32>
    %127 = arith.addf %124, %126 : vector<2x128xf32>
    %cst_21 = arith.constant dense<0.000000e+00> : vector<2x384xf32>
    %128 = tpu.matmul %127, %14, %cst_21 {dimension_numbers = #tpu.dot_dimension_numbers<[1], [0], [0], [1], [0, 0, 1, 1], [], []>} : vector<2x128xf32>, vector<128x384xf32>, vector<2x384xf32> -> vector<2x384xf32>
    %129 = vector.extract_strided_slice %13 {offsets = [3, 0, 0], sizes = [1, 2, 384], strides = [1, 1, 1]} : vector<8x2x384xf32> to vector<1x2x384xf32>
    %130 = vector.shape_cast %129 : vector<1x2x384xf32> to vector<2x384xf32>
    %131 = vector.extract_strided_slice %130 {offsets = [0, 0], sizes = [2, 128], strides = [1, 1]} : vector<2x384xf32> to vector<2x128xf32>
    %132 = vector.extract_strided_slice %128 {offsets = [0, 0], sizes = [2, 128], strides = [1, 1]} : vector<2x384xf32> to vector<2x128xf32>
    %133 = arith.addf %131, %132 : vector<2x128xf32>
    %134 = arith.negf %133 : vector<2x128xf32>
    %135 = math.exp %134 : vector<2x128xf32>
    %cst_22 = arith.constant 1.000000e+00 : f32
    %136 = vector.broadcast %cst_22 : f32 to vector<2x128xf32>
    %137 = arith.addf %136, %135 : vector<2x128xf32>
    %138 = arith.divf %136, %137 : vector<2x128xf32>
    %139 = vector.extract_strided_slice %130 {offsets = [0, 128], sizes = [2, 128], strides = [1, 1]} : vector<2x384xf32> to vector<2x128xf32>
    %140 = vector.extract_strided_slice %128 {offsets = [0, 128], sizes = [2, 128], strides = [1, 1]} : vector<2x384xf32> to vector<2x128xf32>
    %141 = arith.addf %139, %140 : vector<2x128xf32>
    %142 = arith.negf %141 : vector<2x128xf32>
    %143 = math.exp %142 : vector<2x128xf32>
    %cst_23 = arith.constant 1.000000e+00 : f32
    %144 = vector.broadcast %cst_23 : f32 to vector<2x128xf32>
    %145 = arith.addf %144, %143 : vector<2x128xf32>
    %146 = arith.divf %144, %145 : vector<2x128xf32>
    %147 = vector.extract_strided_slice %130 {offsets = [0, 256], sizes = [2, 128], strides = [1, 1]} : vector<2x384xf32> to vector<2x128xf32>
    %148 = vector.extract_strided_slice %128 {offsets = [0, 256], sizes = [2, 128], strides = [1, 1]} : vector<2x384xf32> to vector<2x128xf32>
    %149 = arith.addf %148, %4 : vector<2x128xf32>
    %150 = arith.mulf %138, %149 : vector<2x128xf32>
    %151 = arith.addf %147, %150 : vector<2x128xf32>
    %152 = math.tanh %151 : vector<2x128xf32>
    %153 = arith.subf %127, %152 : vector<2x128xf32>
    %154 = arith.mulf %146, %153 : vector<2x128xf32>
    %155 = arith.addf %152, %154 : vector<2x128xf32>
    %cst_24 = arith.constant dense<0.000000e+00> : vector<2x384xf32>
    %156 = tpu.matmul %155, %14, %cst_24 {dimension_numbers = #tpu.dot_dimension_numbers<[1], [0], [0], [1], [0, 0, 1, 1], [], []>} : vector<2x128xf32>, vector<128x384xf32>, vector<2x384xf32> -> vector<2x384xf32>
    %157 = vector.extract_strided_slice %13 {offsets = [2, 0, 0], sizes = [1, 2, 384], strides = [1, 1, 1]} : vector<8x2x384xf32> to vector<1x2x384xf32>
    %158 = vector.shape_cast %157 : vector<1x2x384xf32> to vector<2x384xf32>
    %159 = vector.extract_strided_slice %158 {offsets = [0, 0], sizes = [2, 128], strides = [1, 1]} : vector<2x384xf32> to vector<2x128xf32>
    %160 = vector.extract_strided_slice %156 {offsets = [0, 0], sizes = [2, 128], strides = [1, 1]} : vector<2x384xf32> to vector<2x128xf32>
    %161 = arith.addf %159, %160 : vector<2x128xf32>
    %162 = arith.negf %161 : vector<2x128xf32>
    %163 = math.exp %162 : vector<2x128xf32>
    %cst_25 = arith.constant 1.000000e+00 : f32
    %164 = vector.broadcast %cst_25 : f32 to vector<2x128xf32>
    %165 = arith.addf %164, %163 : vector<2x128xf32>
    %166 = arith.divf %164, %165 : vector<2x128xf32>
    %167 = vector.extract_strided_slice %158 {offsets = [0, 128], sizes = [2, 128], strides = [1, 1]} : vector<2x384xf32> to vector<2x128xf32>
    %168 = vector.extract_strided_slice %156 {offsets = [0, 128], sizes = [2, 128], strides = [1, 1]} : vector<2x384xf32> to vector<2x128xf32>
    %169 = arith.addf %167, %168 : vector<2x128xf32>
    %170 = arith.negf %169 : vector<2x128xf32>
    %171 = math.exp %170 : vector<2x128xf32>
    %cst_26 = arith.constant 1.000000e+00 : f32
    %172 = vector.broadcast %cst_26 : f32 to vector<2x128xf32>
    %173 = arith.addf %172, %171 : vector<2x128xf32>
    %174 = arith.divf %172, %173 : vector<2x128xf32>
    %175 = vector.extract_strided_slice %158 {offsets = [0, 256], sizes = [2, 128], strides = [1, 1]} : vector<2x384xf32> to vector<2x128xf32>
    %176 = vector.extract_strided_slice %156 {offsets = [0, 256], sizes = [2, 128], strides = [1, 1]} : vector<2x384xf32> to vector<2x128xf32>
    %177 = arith.addf %176, %4 : vector<2x128xf32>
    %178 = arith.mulf %166, %177 : vector<2x128xf32>
    %179 = arith.addf %175, %178 : vector<2x128xf32>
    %180 = math.tanh %179 : vector<2x128xf32>
    %181 = arith.subf %155, %180 : vector<2x128xf32>
    %182 = arith.mulf %174, %181 : vector<2x128xf32>
    %183 = arith.addf %180, %182 : vector<2x128xf32>
    %cst_27 = arith.constant dense<0.000000e+00> : vector<2x384xf32>
    %184 = tpu.matmul %183, %14, %cst_27 {dimension_numbers = #tpu.dot_dimension_numbers<[1], [0], [0], [1], [0, 0, 1, 1], [], []>} : vector<2x128xf32>, vector<128x384xf32>, vector<2x384xf32> -> vector<2x384xf32>
    %185 = vector.extract_strided_slice %13 {offsets = [1, 0, 0], sizes = [1, 2, 384], strides = [1, 1, 1]} : vector<8x2x384xf32> to vector<1x2x384xf32>
    %186 = vector.shape_cast %185 : vector<1x2x384xf32> to vector<2x384xf32>
    %187 = vector.extract_strided_slice %186 {offsets = [0, 0], sizes = [2, 128], strides = [1, 1]} : vector<2x384xf32> to vector<2x128xf32>
    %188 = vector.extract_strided_slice %184 {offsets = [0, 0], sizes = [2, 128], strides = [1, 1]} : vector<2x384xf32> to vector<2x128xf32>
    %189 = arith.addf %187, %188 : vector<2x128xf32>
    %190 = arith.negf %189 : vector<2x128xf32>
    %191 = math.exp %190 : vector<2x128xf32>
    %cst_28 = arith.constant 1.000000e+00 : f32
    %192 = vector.broadcast %cst_28 : f32 to vector<2x128xf32>
    %193 = arith.addf %192, %191 : vector<2x128xf32>
    %194 = arith.divf %192, %193 : vector<2x128xf32>
    %195 = vector.extract_strided_slice %186 {offsets = [0, 128], sizes = [2, 128], strides = [1, 1]} : vector<2x384xf32> to vector<2x128xf32>
    %196 = vector.extract_strided_slice %184 {offsets = [0, 128], sizes = [2, 128], strides = [1, 1]} : vector<2x384xf32> to vector<2x128xf32>
    %197 = arith.addf %195, %196 : vector<2x128xf32>
    %198 = arith.negf %197 : vector<2x128xf32>
    %199 = math.exp %198 : vector<2x128xf32>
    %cst_29 = arith.constant 1.000000e+00 : f32
    %200 = vector.broadcast %cst_29 : f32 to vector<2x128xf32>
    %201 = arith.addf %200, %199 : vector<2x128xf32>
    %202 = arith.divf %200, %201 : vector<2x128xf32>
    %203 = vector.extract_strided_slice %186 {offsets = [0, 256], sizes = [2, 128], strides = [1, 1]} : vector<2x384xf32> to vector<2x128xf32>
    %204 = vector.extract_strided_slice %184 {offsets = [0, 256], sizes = [2, 128], strides = [1, 1]} : vector<2x384xf32> to vector<2x128xf32>
    %205 = arith.addf %204, %4 : vector<2x128xf32>
    %206 = arith.mulf %194, %205 : vector<2x128xf32>
    %207 = arith.addf %203, %206 : vector<2x128xf32>
    %208 = math.tanh %207 : vector<2x128xf32>
    %209 = arith.subf %183, %208 : vector<2x128xf32>
    %210 = arith.mulf %202, %209 : vector<2x128xf32>
    %211 = arith.addf %208, %210 : vector<2x128xf32>
    %cst_30 = arith.constant dense<0.000000e+00> : vector<2x384xf32>
    %212 = tpu.matmul %211, %14, %cst_30 {dimension_numbers = #tpu.dot_dimension_numbers<[1], [0], [0], [1], [0, 0, 1, 1], [], []>} : vector<2x128xf32>, vector<128x384xf32>, vector<2x384xf32> -> vector<2x384xf32>
    %213 = vector.extract_strided_slice %13 {offsets = [0, 0, 0], sizes = [1, 2, 384], strides = [1, 1, 1]} : vector<8x2x384xf32> to vector<1x2x384xf32>
    %214 = vector.shape_cast %213 : vector<1x2x384xf32> to vector<2x384xf32>
    %215 = vector.extract_strided_slice %214 {offsets = [0, 0], sizes = [2, 128], strides = [1, 1]} : vector<2x384xf32> to vector<2x128xf32>
    %216 = vector.extract_strided_slice %212 {offsets = [0, 0], sizes = [2, 128], strides = [1, 1]} : vector<2x384xf32> to vector<2x128xf32>
    %217 = arith.addf %215, %216 : vector<2x128xf32>
    %218 = arith.negf %217 : vector<2x128xf32>
    %219 = math.exp %218 : vector<2x128xf32>
    %cst_31 = arith.constant 1.000000e+00 : f32
    %220 = vector.broadcast %cst_31 : f32 to vector<2x128xf32>
    %221 = arith.addf %220, %219 : vector<2x128xf32>
    %222 = arith.divf %220, %221 : vector<2x128xf32>
    %223 = vector.extract_strided_slice %214 {offsets = [0, 128], sizes = [2, 128], strides = [1, 1]} : vector<2x384xf32> to vector<2x128xf32>
    %224 = vector.extract_strided_slice %212 {offsets = [0, 128], sizes = [2, 128], strides = [1, 1]} : vector<2x384xf32> to vector<2x128xf32>
    %225 = arith.addf %223, %224 : vector<2x128xf32>
    %226 = arith.negf %225 : vector<2x128xf32>
    %227 = math.exp %226 : vector<2x128xf32>
    %cst_32 = arith.constant 1.000000e+00 : f32
    %228 = vector.broadcast %cst_32 : f32 to vector<2x128xf32>
    %229 = arith.addf %228, %227 : vector<2x128xf32>
    %230 = arith.divf %228, %229 : vector<2x128xf32>
    %231 = vector.extract_strided_slice %214 {offsets = [0, 256], sizes = [2, 128], strides = [1, 1]} : vector<2x384xf32> to vector<2x128xf32>
    %232 = vector.extract_strided_slice %212 {offsets = [0, 256], sizes = [2, 128], strides = [1, 1]} : vector<2x384xf32> to vector<2x128xf32>
    %233 = arith.addf %232, %4 : vector<2x128xf32>
    %234 = arith.mulf %222, %233 : vector<2x128xf32>
    %235 = arith.addf %231, %234 : vector<2x128xf32>
    %236 = math.tanh %235 : vector<2x128xf32>
    %237 = arith.subf %211, %236 : vector<2x128xf32>
    %238 = arith.mulf %230, %237 : vector<2x128xf32>
    %239 = arith.addf %236, %238 : vector<2x128xf32>
    %c0_33 = arith.constant 0 : index
    %c0_34 = arith.constant 0 : index
    %240 = vector.load %arg4[%c0_33, %c0_34] : memref<128x32xf32, #tpu.memory_space<vmem>>, vector<128x32xf32>
    %cst_35 = arith.constant dense<0.000000e+00> : vector<2x32xf32>
    %241 = tpu.matmul %239, %240, %cst_35 {dimension_numbers = #tpu.dot_dimension_numbers<[1], [0], [0], [1], [0, 0, 1, 1], [], []>} : vector<2x128xf32>, vector<128x32xf32>, vector<2x32xf32> -> vector<2x32xf32>
    %242 = vector.broadcast %5 : vector<1x32xf32> to vector<2x32xf32>
    %243 = arith.addf %241, %242 : vector<2x32xf32>
    %cst_36 = arith.constant 0.000000e+00 : f32
    %244 = vector.broadcast %cst_36 : f32 to vector<2x32xf32>
    %245 = arith.maximumf %243, %244 : vector<2x32xf32>
    %c0_37 = arith.constant 0 : index
    %c0_38 = arith.constant 0 : index
    %246 = vector.load %arg5[%c0_37, %c0_38] : memref<32x8xf32, #tpu.memory_space<vmem>>, vector<32x8xf32>
    %cst_39 = arith.constant dense<0.000000e+00> : vector<2x8xf32>
    %247 = tpu.matmul %245, %246, %cst_39 {dimension_numbers = #tpu.dot_dimension_numbers<[1], [0], [0], [1], [0, 0, 1, 1], [], []>} : vector<2x32xf32>, vector<32x8xf32>, vector<2x8xf32> -> vector<2x8xf32>
    %248 = vector.broadcast %6 : vector<1x8xf32> to vector<2x8xf32>
    %249 = arith.addf %247, %248 : vector<2x8xf32>
    %c0_40 = arith.constant 0 : index
    %c0_41 = arith.constant 0 : index
    %250 = vector.load %arg6[%c0_40, %c0_41] : memref<2x8xf32, #tpu.memory_space<vmem>>, vector<2x8xf32>
    tpu.vector_store %arg6[%c0_40, %c0_41], %249 {strides = array<i32>} : memref<2x8xf32, #tpu.memory_space<vmem>>, vector<2x8xf32>,
    return
  }
}

</mosaic_0001>

<llo_original>
// kernel: tpu_custom_call.1
$region0: #{tpu_custom_call.1}
  #allocation0 [shape = 'u32[]', space=smem, size = 0x4, offset = 0x4, fixed_abs, tag = 'smem constant byte address 0x4 - core index']
  #allocation1 [shape = 'u32[72,128]{1,0:T(1,128)}', space=vmem, size = 0x9000, scoped, tag = 'internal scratch']
  %s0 = inlined_call_operand.vmem [shape: f32[8,2,4], index: 0, kind: input, shape index: {}]
  %s1 = inlined_call_operand.vmem [shape: f32[4,384], index: 1, kind: input, shape index: {}]
  %s2 = inlined_call_operand.hbm [shape: f32[128,384], index: 2, kind: input, shape index: {}]
  %s3 = inlined_call_operand.vmem [shape: f32[4,384], index: 3, kind: input, shape index: {}]
  %s4 = inlined_call_operand.vmem [shape: f32[128,32], index: 4, kind: input, shape index: {}]
  %s5 = inlined_call_operand.vmem [shape: f32[32,8], index: 5, kind: input, shape index: {}]
  %s6 = inlined_call_operand.hbm [shape: f32[2,8], index: 6, kind: output, shape index: {}]
  %s7 = sld [smem:[#allocation0]]
  $region38: #{tpu_custom_call.1} parent=0
    _
  %s9 = ssub.s32 1, %s7
  %s10 = scalar_select 0, %s9, %s7
  $region1: #{tpu_custom_call.1} parent=0
    #allocation2 [shape = 'u8[196608]{0}', space=vmem, size = 0x30000, scoped, tag = 'input window, operand 2, single buffered']
    #allocation3 [shape = 's32[1]{0}', space=sflag, size = 0x4, scoped, tag = 'scoped memory for tpu_custom_call.1']
    #allocation4 [shape = 's32[1]{0}', space=sflag, size = 0x4, scoped, tag = 'scoped memory for tpu_custom_call.1']
    #allocation5 [shape = 'u8[1024]{0}', space=vmem, size = 0x400, scoped, tag = 'output window, operand 0, single buffered']
    %11 = vsyncpa [#allocation3], 0
    %12 = vsyncpa [#allocation4], 0
    // Predicated region
    $region2: #{tpu_custom_call.1} parent=1 // pred_check
      _
    $region3: #{tpu_custom_call.1} parent=1 // pred_check_branch
      %14 = sbr.rel (0) target = $region5
    $region4: #{tpu_custom_call.1} parent=1 // pred_region
      _
    $region5: #{tpu_custom_call.1} parent=1 // pred_fallthru
      _
    // Predicated region
    $region6: #{tpu_custom_call.1} parent=1 // pred_check
      _
    $region7: #{tpu_custom_call.1} parent=1 // pred_check_branch
      %16 = sbr.rel (0) target = $region9
    $region8: #{tpu_custom_call.1} parent=1 // pred_region
      _
    $region9: #{tpu_custom_call.1} parent=1 // pred_fallthru
      _
    // Predicated region
    $region10: #{tpu_custom_call.1} parent=1 // pred_check
      _
    $region11: #{tpu_custom_call.1} parent=1 // pred_check_branch
      %18 = sbr.rel (0) target = $region13
    $region12: #{tpu_custom_call.1} parent=1 // pred_region
      %20 = vsyncadd [#allocation3], 0
      %s21 = sshll.u32 %s2, 4
      %s22 = int_to_ptr.hbm [resolvable:$true] %s21
      %s23 = sshll.u32 [#allocation2], 4
      %s24 = int_to_ptr.vmem [resolvable:$true] %s23
      %29 = dma.hbm_to_vmem [thread:$0]  %s22, 6144, %s24, [#allocation3], 384, 384, 24
    $region13: #{tpu_custom_call.1} parent=1 // pred_fallthru
      _
    // Predicated region
    $region14: #{tpu_custom_call.1} parent=1 // pred_check
      _
    $region15: #{tpu_custom_call.1} parent=1 // pred_check_branch
      %31 = sbr.rel (0) target = $region17
    $region16: #{tpu_custom_call.1} parent=1 // pred_region
      _
    $region17: #{tpu_custom_call.1} parent=1 // pred_fallthru
      _
    // Predicated region
    $region18: #{tpu_custom_call.1} parent=1 // pred_check
      _
    $region19: #{tpu_custom_call.1} parent=1 // pred_check_branch
      %33 = sbr.rel (0) target = $region21
    $region20: #{tpu_custom_call.1} parent=1 // pred_region
      _
    $region21: #{tpu_custom_call.1} parent=1 // pred_fallthru
      _
    // Predicated region
    $region22: #{tpu_custom_call.1} parent=1 // pred_check
      _
    $region23: #{tpu_custom_call.1} parent=1 // pred_check_branch
      %35 = sbr.rel (0) target = $region25
    $region24: #{tpu_custom_call.1} parent=1 // pred_region
      _
    $region25: #{tpu_custom_call.1} parent=1 // pred_fallthru
      _
    // Predicated region
    $region26: #{tpu_custom_call.1} parent=1 // pred_check
      _
    $region27: #{tpu_custom_call.1} parent=1 // pred_check_branch
      %37 = sbr.rel (0) target = $region29
    $region28: #{tpu_custom_call.1} parent=1 // pred_region
      %39 = dma.done [#allocation3], 6144
    $region29: #{tpu_custom_call.1} parent=1 // pred_fallthru
      _
    %v40 = vld [vmem:[%s3] sm:$0xff]
    %v41 = vld [vmem:[%s3 + $0x8] sm:$0xf]
    %v42 = vperm.slane %v41, 1
    %v43 = vld [vmem:[%s0] sm:$0x3]
    %v44 = vld [vmem:[%s0 + $0x2] sm:$0x3]
    %v45 = vld [vmem:[%s0 + $0x4] sm:$0x3]
    %v46 = vld [vmem:[%s0 + $0x6] sm:$0x3]
    %v47 = vld [vmem:[%s0 + $0x8] sm:$0x3]
    %v48 = vld [vmem:[%s0 + $0xa] sm:$0x3]
    %v49 = vld [vmem:[%s0 + $0xc] sm:$0x3]
    %v50 = vld [vmem:[%s0 + $0xe] sm:$0x3]
    %v51 = vld [vmem:[%s1] sm:$0xff]
    %v52 = vld [vmem:[%s1 + $0x8] sm:$0xf]
    %v55 = vperm.slane %v40, 0
    %v56 = vperm.slane %v40, 4
    %v57 = vperm.slane %v41, 0
    %v61 = vperm.slane %v55, 0
    %v62 = vperm.slane %v56, 0
    %v63 = vperm.slane %v57, 0
    %72 = vst [vmem:[#allocation1] ss:$4 sm:$0xff] %v43
    %s73 = scalar_lea.vmem [#allocation1], 1
    %74 = vst [vmem:[%s73] ss:$4 sm:$0xff] %v44
    %s75 = scalar_lea.vmem [#allocation1], 2
    %76 = vst [vmem:[%s75] ss:$4 sm:$0xff] %v45
    %s77 = scalar_lea.vmem [#allocation1], 3
    %78 = vst [vmem:[%s77] ss:$4 sm:$0xff] %v46
    %s79 = scalar_lea.vmem [#allocation1], 32
    %80 = vst [vmem:[%s79] ss:$4 sm:$0xff] %v47
    %s81 = scalar_lea.vmem [#allocation1], 33
    %82 = vst [vmem:[%s81] ss:$4 sm:$0xff] %v48
    %s83 = scalar_lea.vmem [#allocation1], 34
    %84 = vst [vmem:[%s83] ss:$4 sm:$0xff] %v49
    %s85 = scalar_lea.vmem [#allocation1], 35
    %86 = vst [vmem:[%s85] ss:$4 sm:$0xff] %v50
    %v87 = vld.sshfl [vmem:[#allocation1] sm:$0xff pattern:$0x73625140]
    %v88 = vld.sshfl [vmem:[#allocation1 + $0x20] sm:$0xff pattern:$0x73625140]
    %91 = vst [vmem:[#allocation1] ss:$2 sm:$0xff] %v51
    %s92 = scalar_lea.vmem [#allocation1], 16
    %93 = vst [vmem:[%s92] ss:$2 sm:$0xff] %v52
    %v94 = vld.sshfl [vmem:[#allocation1] sm:$0xff pattern:$0x75316420]
    %v95 = vld.sshfl [vmem:[#allocation1 + $0x8] sm:$0xff pattern:$0x75316420]
    %v96 = vld.sshfl [vmem:[#allocation1 + $0x10] sm:$0xff pattern:$0x75316420]
    %vm97 = vcmask 31744
    %v98 = vsel %vm97, %v87, 0
    %v100 = vsel %vm97, %v88, 0
    %vm102 = vcmask 1043456
    %v103 = vsel %vm102, %v94, 0
    %v105 = vsel %vm102, %v95, 0
    %v107 = vsel %vm102, %v96, 0
    %109 = vmatpush.msra.mxu0 0.0
    %110 = vmatpush.msra.mxu0 0.0
    %111 = vmatpush.msra.mxu0 0.0
    %112 = vmatpush.msra.mxu0 0.0
    %113 = vmatpush.msra.mxu0 0.0
    %114 = vmatpush.msra.mxu0 0.0
    %115 = vmatpush.msra.mxu0 0.0
    %116 = vmatpush.msra.mxu0 0.0
    %117 = vmatpush.msra.mxu0 0.0
    %118 = vmatpush.msra.mxu0 0.0
    %119 = vmatpush.msra.mxu0 0.0
    %120 = vmatpush.msra.mxu0 0.0
    %121 = vmatpush.msra.mxu0 0.0
    %122 = vmatpush.msra.mxu0 0.0
    %123 = vmatpush.msra.mxu0 0.0
    %124 = vmatpush.msra.mxu0 %v103
    %125 = vmatmul.f32.gmra.mxu0 %v98
    %v126 = vpop.f32.mrf.mxu0
    %v127 = vadd.f32 %v61, %v126
    %128 = vmatmul.f32.gmra.mxu0 %v100
    %v129 = vpop.f32.mrf.mxu0
    %v130 = vadd.f32 %v61, %v129
    %131 = vdwg.mxu0
    %132 = vmatpush.msra.mxu0 0.0
    %133 = vmatpush.msra.mxu0 0.0
    %134 = vmatpush.msra.mxu0 0.0
    %135 = vmatpush.msra.mxu0 0.0
    %136 = vmatpush.msra.mxu0 0.0
    %137 = vmatpush.msra.mxu0 0.0
    %138 = vmatpush.msra.mxu0 0.0
    %139 = vmatpush.msra.mxu0 0.0
    %140 = vmatpush.msra.mxu0 0.0
    %141 = vmatpush.msra.mxu0 0.0
    %142 = vmatpush.msra.mxu0 0.0
    %143 = vmatpush.msra.mxu0 0.0
    %144 = vmatpush.msra.mxu0 0.0
    %145 = vmatpush.msra.mxu0 0.0
    %146 = vmatpush.msra.mxu0 0.0
    %147 = vmatpush.msra.mxu0 %v105
    %148 = vmatmul.f32.gmra.mxu0 %v98
    %v149 = vpop.f32.mrf.mxu0
    %v150 = vadd.f32 %v62, %v149
    %151 = vmatmul.f32.gmra.mxu0 %v100
    %v152 = vpop.f32.mrf.mxu0
    %v153 = vadd.f32 %v62, %v152
    %154 = vdwg.mxu0
    %155 = vmatpush.msra.mxu0 0.0
    %156 = vmatpush.msra.mxu0 0.0
    %157 = vmatpush.msra.mxu0 0.0
    %158 = vmatpush.msra.mxu0 0.0
    %159 = vmatpush.msra.mxu0 0.0
    %160 = vmatpush.msra.mxu0 0.0
    %161 = vmatpush.msra.mxu0 0.0
    %162 = vmatpush.msra.mxu0 0.0
    %163 = vmatpush.msra.mxu0 0.0
    %164 = vmatpush.msra.mxu0 0.0
    %165 = vmatpush.msra.mxu0 0.0
    %166 = vmatpush.msra.mxu0 0.0
    %167 = vmatpush.msra.mxu0 0.0
    %168 = vmatpush.msra.mxu0 0.0
    %169 = vmatpush.msra.mxu0 0.0
    %170 = vmatpush.msra.mxu0 %v107
    %171 = vmatmul.f32.gmra.mxu0 %v98
    %v172 = vpop.f32.mrf.mxu0
    %v173 = vadd.f32 %v63, %v172
    %174 = vmatmul.f32.gmra.mxu0 %v100
    %v175 = vpop.f32.mrf.mxu0
    %v176 = vadd.f32 %v63, %v175
    %177 = vdwg.mxu0
    %v184 = vrot.slane %v150, 6
    %v185 = vrot.slane %v173, 4
    %v186 = vrot.slane %v153, 6
    %v187 = vrot.slane %v176, 4
    %vm188 = vcmask 1041408
    %v189 = vsel %vm188, %v127, %v184
    %v190 = vsel %vm102, %v189, %v185
    %vm191 = vcmask 1043458
    %v192 = vsel %vm191, %v127, %v184
    %vm193 = vcmask 1045506
    %v194 = vsel %vm193, %v192, %v185
    %v195 = vrot.slane %v194, 2
    %vm196 = vcmask 1045508
    %v197 = vsel %vm196, %v127, %v184
    %v198 = vsel %vm102, %v185, %v197
    %v199 = vrot.slane %v198, 4
    %vm200 = vcmask 1045504
    %v201 = vsel %vm200, %v184, %v127
    %v202 = vsel %vm193, %v185, %v201
    %v203 = vrot.slane %v202, 6
    %v204 = vsel %vm188, %v130, %v186
    %v205 = vsel %vm102, %v204, %v187
    %v206 = vsel %vm191, %v130, %v186
    %v207 = vsel %vm193, %v206, %v187
    %v208 = vrot.slane %v207, 2
    %v209 = vsel %vm196, %v130, %v186
    %v210 = vsel %vm102, %v187, %v209
    %v211 = vrot.slane %v210, 4
    %v212 = vsel %vm200, %v186, %v130
    %v213 = vsel %vm193, %v187, %v212
    %v214 = vrot.slane %v213, 6
    %v223 = vld [vmem:[#allocation2] sm:$0xff]
    %v224 = vld [vmem:[#allocation2 + $0x8] sm:$0xff]
    %v225 = vld [vmem:[#allocation2 + $0x10] sm:$0xff]
    %v226 = vld [vmem:[#allocation2 + $0x18] sm:$0xff]
    %v227 = vld [vmem:[#allocation2 + $0x20] sm:$0xff]
    %v228 = vld [vmem:[#allocation2 + $0x28] sm:$0xff]
    %v229 = vld [vmem:[#allocation2 + $0x30] sm:$0xff]
    %v230 = vld [vmem:[#allocation2 + $0x38] sm:$0xff]
    %v231 = vld [vmem:[#allocation2 + $0x40] sm:$0xff]
    %v232 = vld [vmem:[#allocation2 + $0x48] sm:$0xff]
    %v233 = vld [vmem:[#allocation2 + $0x50] sm:$0xff]
    %v234 = vld [vmem:[#allocation2 + $0x58] sm:$0xff]
    %v235 = vld [vmem:[#allocation2 + $0x60] sm:$0xff]
    %v236 = vld [vmem:[#allocation2 + $0x68] sm:$0xff]
    %v237 = vld [vmem:[#allocation2 + $0x70] sm:$0xff]
    %v238 = vld [vmem:[#allocation2 + $0x78] sm:$0xff]
    %v239 = vld [vmem:[#allocation2 + $0x80] sm:$0xff]
    %v240 = vld [vmem:[#allocation2 + $0x88] sm:$0xff]
    %v241 = vld [vmem:[#allocation2 + $0x90] sm:$0xff]
    %v242 = vld [vmem:[#allocation2 + $0x98] sm:$0xff]
    %v243 = vld [vmem:[#allocation2 + $0xa0] sm:$0xff]
    %v244 = vld [vmem:[#allocation2 + $0xa8] sm:$0xff]
    %v245 = vld [vmem:[#allocation2 + $0xb0] sm:$0xff]
    %v246 = vld [vmem:[#allocation2 + $0xb8] sm:$0xff]
    %v247 = vld [vmem:[#allocation2 + $0xc0] sm:$0xff]
    %v248 = vld [vmem:[#allocation2 + $0xc8] sm:$0xff]
    %v249 = vld [vmem:[#allocation2 + $0xd0] sm:$0xff]
    %v250 = vld [vmem:[#allocation2 + $0xd8] sm:$0xff]
    %v251 = vld [vmem:[#allocation2 + $0xe0] sm:$0xff]
    %v252 = vld [vmem:[#allocation2 + $0xe8] sm:$0xff]
    %v253 = vld [vmem:[#allocation2 + $0xf0] sm:$0xff]
    %v254 = vld [vmem:[#allocation2 + $0xf8] sm:$0xff]
    %v255 = vld [vmem:[#allocation2 + $0x100] sm:$0xff]
    %v256 = vld [vmem:[#allocation2 + $0x108] sm:$0xff]
    %v257 = vld [vmem:[#allocation2 + $0x110] sm:$0xff]
    %v258 = vld [vmem:[#allocation2 + $0x118] sm:$0xff]
    %v259 = vld [vmem:[#allocation2 + $0x120] sm:$0xff]
    %v260 = vld [vmem:[#allocation2 + $0x128] sm:$0xff]
    %v261 = vld [vmem:[#allocation2 + $0x130] sm:$0xff]
    %v262 = vld [vmem:[#allocation2 + $0x138] sm:$0xff]
    %v263 = vld [vmem:[#allocation2 + $0x140] sm:$0xff]
    %v264 = vld [vmem:[#allocation2 + $0x148] sm:$0xff]
    %v265 = vld [vmem:[#allocation2 + $0x150] sm:$0xff]
    %v266 = vld [vmem:[#allocation2 + $0x158] sm:$0xff]
    %v267 = vld [vmem:[#allocation2 + $0x160] sm:$0xff]
    %v268 = vld [vmem:[#allocation2 + $0x168] sm:$0xff]
    %v269 = vld [vmem:[#allocation2 + $0x170] sm:$0xff]
    %v270 = vld [vmem:[#allocation2 + $0x178] sm:$0xff]
    %271 = vmatpush.msra.mxu0 %v268
    %272 = vmatpush.msra.mxu0 %v265
    %273 = vmatpush.msra.mxu0 %v262
    %274 = vmatpush.msra.mxu0 %v259
    %275 = vmatpush.msra.mxu0 %v256
    %276 = vmatpush.msra.mxu0 %v253
    %277 = vmatpush.msra.mxu0 %v250
    %278 = vmatpush.msra.mxu0 %v247
    %279 = vmatpush.msra.mxu0 %v244
    %280 = vmatpush.msra.mxu0 %v241
    %281 = vmatpush.msra.mxu0 %v238
    %282 = vmatpush.msra.mxu0 %v235
    %283 = vmatpush.msra.mxu0 %v232
    %284 = vmatpush.msra.mxu0 %v229
    %285 = vmatpush.msra.mxu0 %v226
    %286 = vmatpush.msra.mxu0 %v223
    %287 = vmatmul.f32.gmra.mxu0 0.0
    %v288 = vpop.f32.mrf.mxu0
    %v289 = vadd.f32 0.0, %v288
    %290 = vdwg.mxu0
    %291 = vmatpush.msra.mxu0 %v269
    %292 = vmatpush.msra.mxu0 %v266
    %293 = vmatpush.msra.mxu0 %v263
    %294 = vmatpush.msra.mxu0 %v260
    %295 = vmatpush.msra.mxu0 %v257
    %296 = vmatpush.msra.mxu0 %v254
    %297 = vmatpush.msra.mxu0 %v251
    %298 = vmatpush.msra.mxu0 %v248
    %299 = vmatpush.msra.mxu0 %v245
    %300 = vmatpush.msra.mxu0 %v242
    %301 = vmatpush.msra.mxu0 %v239
    %302 = vmatpush.msra.mxu0 %v236
    %303 = vmatpush.msra.mxu0 %v233
    %304 = vmatpush.msra.mxu0 %v230
    %305 = vmatpush.msra.mxu0 %v227
    %306 = vmatpush.msra.mxu0 %v224
    %307 = vmatmul.f32.gmra.mxu0 0.0
    %v308 = vpop.f32.mrf.mxu0
    %v309 = vadd.f32 0.0, %v308
    %310 = vdwg.mxu0
    %311 = vmatpush.msra.mxu0 %v270
    %312 = vmatpush.msra.mxu0 %v267
    %313 = vmatpush.msra.mxu0 %v264
    %314 = vmatpush.msra.mxu0 %v261
    %315 = vmatpush.msra.mxu0 %v258
    %316 = vmatpush.msra.mxu0 %v255
    %317 = vmatpush.msra.mxu0 %v252
    %318 = vmatpush.msra.mxu0 %v249
    %319 = vmatpush.msra.mxu0 %v246
    %320 = vmatpush.msra.mxu0 %v243
    %321 = vmatpush.msra.mxu0 %v240
    %322 = vmatpush.msra.mxu0 %v237
    %323 = vmatpush.msra.mxu0 %v234
    %324 = vmatpush.msra.mxu0 %v231
    %325 = vmatpush.msra.mxu0 %v228
    %326 = vmatpush.msra.mxu0 %v225
    %327 = vmatmul.f32.gmra.mxu0 0.0
    %v328 = vpop.f32.mrf.mxu0
    %v329 = vadd.f32 0.0, %v328
    %330 = vdwg.mxu0
    %v331 = vadd.f32 %v214, %v289
    %v332 = vxor.u32 %v331, 2147483648
    %v333 = vmul.f32 %v332, 1.442695
    %v334 = vpow.pop %v333
    %v335 = vadd.f32 %v334, 1.0
    %v336 = vrcp.pop %v335
    %v337 = vmul.f32 %v335, %v336
    %v338 = vsub.f32 1.0, %v337
    %v339 = vmul.f32 %v336, %v338
    %v340 = vadd.f32 %v336, %v339
    %vm341 = vweird.f32 %v335
    %vm342 = vweird.f32 %v336
    %vm343 = vmor %vm341, %vm342
    %v344 = vsel %vm343, %v336, %v340
    %v345 = vand.u32 2147483647, %v335
    %vm346 = vcmp.eq.f32.partialorder %v345, 8.507059e+37
    %v347 = vand.u32 %v335, 2147483648
    %v348 = vor.u32 1.1754944e-38, %v347
    %v349 = vsel %vm346, %v348, %v344
    %v350 = vmul.f32 1.0, %v349
    %v351 = vrot.slane %v214, 2
    %v353 = vadd.f32 %v351, %v309
    %v354 = vxor.u32 %v353, 2147483648
    %v355 = vmul.f32 %v354, 1.442695
    %v356 = vpow.pop %v355
    %v357 = vadd.f32 %v356, 1.0
    %v358 = vrcp.pop %v357
    %v359 = vmul.f32 %v357, %v358
    %v360 = vsub.f32 1.0, %v359
    %v361 = vmul.f32 %v358, %v360
    %v362 = vadd.f32 %v358, %v361
    %vm363 = vweird.f32 %v357
    %vm364 = vweird.f32 %v358
    %vm365 = vmor %vm363, %vm364
    %v366 = vsel %vm365, %v358, %v362
    %v367 = vand.u32 2147483647, %v357
    %vm368 = vcmp.eq.f32.partialorder %v367, 8.507059e+37
    %v369 = vand.u32 %v357, 2147483648
    %v370 = vor.u32 1.1754944e-38, %v369
    %v371 = vsel %vm368, %v370, %v366
    %v372 = vmul.f32 1.0, %v371
    %v373 = vadd.f32 %v329, %v42
    %v374 = vmul.f32 %v350, %v373
    %v375 = vrot.slane %v214, 4
    %v377 = vadd.f32 %v375, %v374
    %v378 = vtanh.pop %v377
    %v379 = vsub.f32 0.0, %v378
    %v380 = vmul.f32 %v372, %v379
    %v381 = vadd.f32 %v378, %v380
    %382 = vmatpush.msra.mxu0 %v268
    %383 = vmatpush.msra.mxu0 %v265
    %384 = vmatpush.msra.mxu0 %v262
    %385 = vmatpush.msra.mxu0 %v259
    %386 = vmatpush.msra.mxu0 %v256
    %387 = vmatpush.msra.mxu0 %v253
    %388 = vmatpush.msra.mxu0 %v250
    %389 = vmatpush.msra.mxu0 %v247
    %390 = vmatpush.msra.mxu0 %v244
    %391 = vmatpush.msra.mxu0 %v241
    %392 = vmatpush.msra.mxu0 %v238
    %393 = vmatpush.msra.mxu0 %v235
    %394 = vmatpush.msra.mxu0 %v232
    %395 = vmatpush.msra.mxu0 %v229
    %396 = vmatpush.msra.mxu0 %v226
    %397 = vmatpush.msra.mxu0 %v223
    %398 = vmatmul.f32.gmra.mxu0 %v381
    %v399 = vpop.f32.mrf.mxu0
    %v400 = vadd.f32 0.0, %v399
    %401 = vdwg.mxu0
    %402 = vmatpush.msra.mxu0 %v269
    %403 = vmatpush.msra.mxu0 %v266
    %404 = vmatpush.msra.mxu0 %v263
    %405 = vmatpush.msra.mxu0 %v260
    %406 = vmatpush.msra.mxu0 %v257
    %407 = vmatpush.msra.mxu0 %v254
    %408 = vmatpush.msra.mxu0 %v251
    %409 = vmatpush.msra.mxu0 %v248
    %410 = vmatpush.msra.mxu0 %v245
    %411 = vmatpush.msra.mxu0 %v242
    %412 = vmatpush.msra.mxu0 %v239
    %413 = vmatpush.msra.mxu0 %v236
    %414 = vmatpush.msra.mxu0 %v233
    %415 = vmatpush.msra.mxu0 %v230
    %416 = vmatpush.msra.mxu0 %v227
    %417 = vmatpush.msra.mxu0 %v224
    %418 = vmatmul.f32.gmra.mxu0 %v381
    %v419 = vpop.f32.mrf.mxu0
    %v420 = vadd.f32 0.0, %v419
    %421 = vdwg.mxu0
    %422 = vmatpush.msra.mxu0 %v270
    %423 = vmatpush.msra.mxu0 %v267
    %424 = vmatpush.msra.mxu0 %v264
    %425 = vmatpush.msra.mxu0 %v261
    %426 = vmatpush.msra.mxu0 %v258
    %427 = vmatpush.msra.mxu0 %v255
    %428 = vmatpush.msra.mxu0 %v252
    %429 = vmatpush.msra.mxu0 %v249
    %430 = vmatpush.msra.mxu0 %v246
    %431 = vmatpush.msra.mxu0 %v243
    %432 = vmatpush.msra.mxu0 %v240
    %433 = vmatpush.msra.mxu0 %v237
    %434 = vmatpush.msra.mxu0 %v234
    %435 = vmatpush.msra.mxu0 %v231
    %436 = vmatpush.msra.mxu0 %v228
    %437 = vmatpush.msra.mxu0 %v225
    %438 = vmatmul.f32.gmra.mxu0 %v381
    %v439 = vpop.f32.mrf.mxu0
    %v440 = vadd.f32 0.0, %v439
    %441 = vdwg.mxu0
    %v442 = vadd.f32 %v211, %v400
    %v443 = vxor.u32 %v442, 2147483648
    %v444 = vmul.f32 %v443, 1.442695
    %v445 = vpow.pop %v444
    %v446 = vadd.f32 %v445, 1.0
    %v447 = vrcp.pop %v446
    %v448 = vmul.f32 %v446, %v447
    %v449 = vsub.f32 1.0, %v448
    %v450 = vmul.f32 %v447, %v449
    %v451 = vadd.f32 %v447, %v450
    %vm452 = vweird.f32 %v446
    %vm453 = vweird.f32 %v447
    %vm454 = vmor %vm452, %vm453
    %v455 = vsel %vm454, %v447, %v451
    %v456 = vand.u32 2147483647, %v446
    %vm457 = vcmp.eq.f32.partialorder %v456, 8.507059e+37
    %v458 = vand.u32 %v446, 2147483648
    %v459 = vor.u32 1.1754944e-38, %v458
    %v460 = vsel %vm457, %v459, %v455
    %v461 = vmul.f32 1.0, %v460
    %v462 = vrot.slane %v211, 2
    %v464 = vadd.f32 %v462, %v420
    %v465 = vxor.u32 %v464, 2147483648
    %v466 = vmul.f32 %v465, 1.442695
    %v467 = vpow.pop %v466
    %v468 = vadd.f32 %v467, 1.0
    %v469 = vrcp.pop %v468
    %v470 = vmul.f32 %v468, %v469
    %v471 = vsub.f32 1.0, %v470
    %v472 = vmul.f32 %v469, %v471
    %v473 = vadd.f32 %v469, %v472
    %vm474 = vweird.f32 %v468
    %vm475 = vweird.f32 %v469
    %vm476 = vmor %vm474, %vm475
    %v477 = vsel %vm476, %v469, %v473
    %v478 = vand.u32 2147483647, %v468
    %vm479 = vcmp.eq.f32.partialorder %v478, 8.507059e+37
    %v480 = vand.u32 %v468, 2147483648
    %v481 = vor.u32 1.1754944e-38, %v480
    %v482 = vsel %vm479, %v481, %v477
    %v483 = vmul.f32 1.0, %v482
    %v484 = vadd.f32 %v440, %v42
    %v485 = vmul.f32 %v461, %v484
    %v486 = vrot.slane %v211, 4
    %v488 = vadd.f32 %v486, %v485
    %v489 = vtanh.pop %v488
    %v490 = vsub.f32 %v381, %v489
    %v491 = vmul.f32 %v483, %v490
    %v492 = vadd.f32 %v489, %v491
    %493 = vmatpush.msra.mxu0 %v268
    %494 = vmatpush.msra.mxu0 %v265
    %495 = vmatpush.msra.mxu0 %v262
    %496 = vmatpush.msra.mxu0 %v259
    %497 = vmatpush.msra.mxu0 %v256
    %498 = vmatpush.msra.mxu0 %v253
    %499 = vmatpush.msra.mxu0 %v250
    %500 = vmatpush.msra.mxu0 %v247
    %501 = vmatpush.msra.mxu0 %v244
    %502 = vmatpush.msra.mxu0 %v241
    %503 = vmatpush.msra.mxu0 %v238
    %504 = vmatpush.msra.mxu0 %v235
    %505 = vmatpush.msra.mxu0 %v232
    %506 = vmatpush.msra.mxu0 %v229
    %507 = vmatpush.msra.mxu0 %v226
    %508 = vmatpush.msra.mxu0 %v223
    %509 = vmatmul.f32.gmra.mxu0 %v492
    %v510 = vpop.f32.mrf.mxu0
    %v511 = vadd.f32 0.0, %v510
    %512 = vdwg.mxu0
    %513 = vmatpush.msra.mxu0 %v269
    %514 = vmatpush.msra.mxu0 %v266
    %515 = vmatpush.msra.mxu0 %v263
    %516 = vmatpush.msra.mxu0 %v260
    %517 = vmatpush.msra.mxu0 %v257
    %518 = vmatpush.msra.mxu0 %v254
    %519 = vmatpush.msra.mxu0 %v251
    %520 = vmatpush.msra.mxu0 %v248
    %521 = vmatpush.msra.mxu0 %v245
    %522 = vmatpush.msra.mxu0 %v242
    %523 = vmatpush.msra.mxu0 %v239
    %524 = vmatpush.msra.mxu0 %v236
    %525 = vmatpush.msra.mxu0 %v233
    %526 = vmatpush.msra.mxu0 %v230
    %527 = vmatpush.msra.mxu0 %v227
    %528 = vmatpush.msra.mxu0 %v224
    %529 = vmatmul.f32.gmra.mxu0 %v492
    %v530 = vpop.f32.mrf.mxu0
    %v531 = vadd.f32 0.0, %v530
    %532 = vdwg.mxu0
    %533 = vmatpush.msra.mxu0 %v270
    %534 = vmatpush.msra.mxu0 %v267
    %535 = vmatpush.msra.mxu0 %v264
    %536 = vmatpush.msra.mxu0 %v261
    %537 = vmatpush.msra.mxu0 %v258
    %538 = vmatpush.msra.mxu0 %v255
    %539 = vmatpush.msra.mxu0 %v252
    %540 = vmatpush.msra.mxu0 %v249
    %541 = vmatpush.msra.mxu0 %v246
    %542 = vmatpush.msra.mxu0 %v243
    %543 = vmatpush.msra.mxu0 %v240
    %544 = vmatpush.msra.mxu0 %v237
    %545 = vmatpush.msra.mxu0 %v234
    %546 = vmatpush.msra.mxu0 %v231
    %547 = vmatpush.msra.mxu0 %v228
    %548 = vmatpush.msra.mxu0 %v225
    %549 = vmatmul.f32.gmra.mxu0 %v492
    %v550 = vpop.f32.mrf.mxu0
    %v551 = vadd.f32 0.0, %v550
    %552 = vdwg.mxu0
    %v553 = vadd.f32 %v208, %v511
    %v554 = vxor.u32 %v553, 2147483648
    %v555 = vmul.f32 %v554, 1.442695
    %v556 = vpow.pop %v555
    %v557 = vadd.f32 %v556, 1.0
    %v558 = vrcp.pop %v557
    %v559 = vmul.f32 %v557, %v558
    %v560 = vsub.f32 1.0, %v559
    %v561 = vmul.f32 %v558, %v560
    %v562 = vadd.f32 %v558, %v561
    %vm563 = vweird.f32 %v557
    %vm564 = vweird.f32 %v558
    %vm565 = vmor %vm563, %vm564
    %v566 = vsel %vm565, %v558, %v562
    %v567 = vand.u32 2147483647, %v557
    %vm568 = vcmp.eq.f32.partialorder %v567, 8.507059e+37
    %v569 = vand.u32 %v557, 2147483648
    %v570 = vor.u32 1.1754944e-38, %v569
    %v571 = vsel %vm568, %v570, %v566
    %v572 = vmul.f32 1.0, %v571
    %v573 = vrot.slane %v208, 2
    %v575 = vadd.f32 %v573, %v531
    %v576 = vxor.u32 %v575, 2147483648
    %v577 = vmul.f32 %v576, 1.442695
    %v578 = vpow.pop %v577
    %v579 = vadd.f32 %v578, 1.0
    %v580 = vrcp.pop %v579
    %v581 = vmul.f32 %v579, %v580
    %v582 = vsub.f32 1.0, %v581
    %v583 = vmul.f32 %v580, %v582
    %v584 = vadd.f32 %v580, %v583
    %vm585 = vweird.f32 %v579
    %vm586 = vweird.f32 %v580
    %vm587 = vmor %vm585, %vm586
    %v588 = vsel %vm587, %v580, %v584
    %v589 = vand.u32 2147483647, %v579
    %vm590 = vcmp.eq.f32.partialorder %v589, 8.507059e+37
    %v591 = vand.u32 %v579, 2147483648
    %v592 = vor.u32 1.1754944e-38, %v591
    %v593 = vsel %vm590, %v592, %v588
    %v594 = vmul.f32 1.0, %v593
    %v595 = vadd.f32 %v551, %v42
    %v596 = vmul.f32 %v572, %v595
    %v597 = vrot.slane %v208, 4
    %v599 = vadd.f32 %v597, %v596
    %v600 = vtanh.pop %v599
    %v601 = vsub.f32 %v492, %v600
    %v602 = vmul.f32 %v594, %v601
    %v603 = vadd.f32 %v600, %v602
    %604 = vmatpush.msra.mxu0 %v268
    %605 = vmatpush.msra.mxu0 %v265
    %606 = vmatpush.msra.mxu0 %v262
    %607 = vmatpush.msra.mxu0 %v259
    %608 = vmatpush.msra.mxu0 %v256
    %609 = vmatpush.msra.mxu0 %v253
    %610 = vmatpush.msra.mxu0 %v250
    %611 = vmatpush.msra.mxu0 %v247
    %612 = vmatpush.msra.mxu0 %v244
    %613 = vmatpush.msra.mxu0 %v241
    %614 = vmatpush.msra.mxu0 %v238
    %615 = vmatpush.msra.mxu0 %v235
    %616 = vmatpush.msra.mxu0 %v232
    %617 = vmatpush.msra.mxu0 %v229
    %618 = vmatpush.msra.mxu0 %v226
    %619 = vmatpush.msra.mxu0 %v223
    %620 = vmatmul.f32.gmra.mxu0 %v603
    %v621 = vpop.f32.mrf.mxu0
    %v622 = vadd.f32 0.0, %v621
    %623 = vdwg.mxu0
    %624 = vmatpush.msra.mxu0 %v269
    %625 = vmatpush.msra.mxu0 %v266
    %626 = vmatpush.msra.mxu0 %v263
    %627 = vmatpush.msra.mxu0 %v260
    %628 = vmatpush.msra.mxu0 %v257
    %629 = vmatpush.msra.mxu0 %v254
    %630 = vmatpush.msra.mxu0 %v251
    %631 = vmatpush.msra.mxu0 %v248
    %632 = vmatpush.msra.mxu0 %v245
    %633 = vmatpush.msra.mxu0 %v242
    %634 = vmatpush.msra.mxu0 %v239
    %635 = vmatpush.msra.mxu0 %v236
    %636 = vmatpush.msra.mxu0 %v233
    %637 = vmatpush.msra.mxu0 %v230
    %638 = vmatpush.msra.mxu0 %v227
    %639 = vmatpush.msra.mxu0 %v224
    %640 = vmatmul.f32.gmra.mxu0 %v603
    %v641 = vpop.f32.mrf.mxu0
    %v642 = vadd.f32 0.0, %v641
    %643 = vdwg.mxu0
    %644 = vmatpush.msra.mxu0 %v270
    %645 = vmatpush.msra.mxu0 %v267
    %646 = vmatpush.msra.mxu0 %v264
    %647 = vmatpush.msra.mxu0 %v261
    %648 = vmatpush.msra.mxu0 %v258
    %649 = vmatpush.msra.mxu0 %v255
    %650 = vmatpush.msra.mxu0 %v252
    %651 = vmatpush.msra.mxu0 %v249
    %652 = vmatpush.msra.mxu0 %v246
    %653 = vmatpush.msra.mxu0 %v243
    %654 = vmatpush.msra.mxu0 %v240
    %655 = vmatpush.msra.mxu0 %v237
    %656 = vmatpush.msra.mxu0 %v234
    %657 = vmatpush.msra.mxu0 %v231
    %658 = vmatpush.msra.mxu0 %v228
    %659 = vmatpush.msra.mxu0 %v225
    %660 = vmatmul.f32.gmra.mxu0 %v603
    %v661 = vpop.f32.mrf.mxu0
    %v662 = vadd.f32 0.0, %v661
    %663 = vdwg.mxu0
    %v664 = vadd.f32 %v205, %v622
    %v665 = vxor.u32 %v664, 2147483648
    %v666 = vmul.f32 %v665, 1.442695
    %v667 = vpow.pop %v666
    %v668 = vadd.f32 %v667, 1.0
    %v669 = vrcp.pop %v668
    %v670 = vmul.f32 %v668, %v669
    %v671 = vsub.f32 1.0, %v670
    %v672 = vmul.f32 %v669, %v671
    %v673 = vadd.f32 %v669, %v672
    %vm674 = vweird.f32 %v668
    %vm675 = vweird.f32 %v669
    %vm676 = vmor %vm674, %vm675
    %v677 = vsel %vm676, %v669, %v673
    %v678 = vand.u32 2147483647, %v668
    %vm679 = vcmp.eq.f32.partialorder %v678, 8.507059e+37
    %v680 = vand.u32 %v668, 2147483648
    %v681 = vor.u32 1.1754944e-38, %v680
    %v682 = vsel %vm679, %v681, %v677
    %v683 = vmul.f32 1.0, %v682
    %v684 = vrot.slane %v205, 2
    %v686 = vadd.f32 %v684, %v642
    %v687 = vxor.u32 %v686, 2147483648
    %v688 = vmul.f32 %v687, 1.442695
    %v689 = vpow.pop %v688
    %v690 = vadd.f32 %v689, 1.0
    %v691 = vrcp.pop %v690
    %v692 = vmul.f32 %v690, %v691
    %v693 = vsub.f32 1.0, %v692
    %v694 = vmul.f32 %v691, %v693
    %v695 = vadd.f32 %v691, %v694
    %vm696 = vweird.f32 %v690
    %vm697 = vweird.f32 %v691
    %vm698 = vmor %vm696, %vm697
    %v699 = vsel %vm698, %v691, %v695
    %v700 = vand.u32 2147483647, %v690
    %vm701 = vcmp.eq.f32.partialorder %v700, 8.507059e+37
    %v702 = vand.u32 %v690, 2147483648
    %v703 = vor.u32 1.1754944e-38, %v702
    %v704 = vsel %vm701, %v703, %v699
    %v705 = vmul.f32 1.0, %v704
    %v706 = vadd.f32 %v662, %v42
    %v707 = vmul.f32 %v683, %v706
    %v708 = vrot.slane %v205, 4
    %v710 = vadd.f32 %v708, %v707
    %v711 = vtanh.pop %v710
    %v712 = vsub.f32 %v603, %v711
    %v713 = vmul.f32 %v705, %v712
    %v714 = vadd.f32 %v711, %v713
    %715 = vmatpush.msra.mxu0 %v268
    %716 = vmatpush.msra.mxu0 %v265
    %717 = vmatpush.msra.mxu0 %v262
    %718 = vmatpush.msra.mxu0 %v259
    %719 = vmatpush.msra.mxu0 %v256
    %720 = vmatpush.msra.mxu0 %v253
    %721 = vmatpush.msra.mxu0 %v250
    %722 = vmatpush.msra.mxu0 %v247
    %723 = vmatpush.msra.mxu0 %v244
    %724 = vmatpush.msra.mxu0 %v241
    %725 = vmatpush.msra.mxu0 %v238
    %726 = vmatpush.msra.mxu0 %v235
    %727 = vmatpush.msra.mxu0 %v232
    %728 = vmatpush.msra.mxu0 %v229
    %729 = vmatpush.msra.mxu0 %v226
    %730 = vmatpush.msra.mxu0 %v223
    %731 = vmatmul.f32.gmra.mxu0 %v714
    %v732 = vpop.f32.mrf.mxu0
    %v733 = vadd.f32 0.0, %v732
    %734 = vdwg.mxu0
    %735 = vmatpush.msra.mxu0 %v269
    %736 = vmatpush.msra.mxu0 %v266
    %737 = vmatpush.msra.mxu0 %v263
    %738 = vmatpush.msra.mxu0 %v260
    %739 = vmatpush.msra.mxu0 %v257
    %740 = vmatpush.msra.mxu0 %v254
    %741 = vmatpush.msra.mxu0 %v251
    %742 = vmatpush.msra.mxu0 %v248
    %743 = vmatpush.msra.mxu0 %v245
    %744 = vmatpush.msra.mxu0 %v242
    %745 = vmatpush.msra.mxu0 %v239
    %746 = vmatpush.msra.mxu0 %v236
    %747 = vmatpush.msra.mxu0 %v233
    %748 = vmatpush.msra.mxu0 %v230
    %749 = vmatpush.msra.mxu0 %v227
    %750 = vmatpush.msra.mxu0 %v224
    %751 = vmatmul.f32.gmra.mxu0 %v714
    %v752 = vpop.f32.mrf.mxu0
    %v753 = vadd.f32 0.0, %v752
    %754 = vdwg.mxu0
    %755 = vmatpush.msra.mxu0 %v270
    %756 = vmatpush.msra.mxu0 %v267
    %757 = vmatpush.msra.mxu0 %v264
    %758 = vmatpush.msra.mxu0 %v261
    %759 = vmatpush.msra.mxu0 %v258
    %760 = vmatpush.msra.mxu0 %v255
    %761 = vmatpush.msra.mxu0 %v252
    %762 = vmatpush.msra.mxu0 %v249
    %763 = vmatpush.msra.mxu0 %v246
    %764 = vmatpush.msra.mxu0 %v243
    %765 = vmatpush.msra.mxu0 %v240
    %766 = vmatpush.msra.mxu0 %v237
    %767 = vmatpush.msra.mxu0 %v234
    %768 = vmatpush.msra.mxu0 %v231
    %769 = vmatpush.msra.mxu0 %v228
    %770 = vmatpush.msra.mxu0 %v225
    %771 = vmatmul.f32.gmra.mxu0 %v714
    %v772 = vpop.f32.mrf.mxu0
    %v773 = vadd.f32 0.0, %v772
    %774 = vdwg.mxu0
    %v775 = vadd.f32 %v203, %v733
    %v776 = vxor.u32 %v775, 2147483648
    %v777 = vmul.f32 %v776, 1.442695
    %v778 = vpow.pop %v777
    %v779 = vadd.f32 %v778, 1.0
    %v780 = vrcp.pop %v779
    %v781 = vmul.f32 %v779, %v780
    %v782 = vsub.f32 1.0, %v781
    %v783 = vmul.f32 %v780, %v782
    %v784 = vadd.f32 %v780, %v783
    %vm785 = vweird.f32 %v779
    %vm786 = vweird.f32 %v780
    %vm787 = vmor %vm785, %vm786
    %v788 = vsel %vm787, %v780, %v784
    %v789 = vand.u32 2147483647, %v779
    %vm790 = vcmp.eq.f32.partialorder %v789, 8.507059e+37
    %v791 = vand.u32 %v779, 2147483648
    %v792 = vor.u32 1.1754944e-38, %v791
    %v793 = vsel %vm790, %v792, %v788
    %v794 = vmul.f32 1.0, %v793
    %v795 = vrot.slane %v203, 2
    %v797 = vadd.f32 %v795, %v753
    %v798 = vxor.u32 %v797, 2147483648
    %v799 = vmul.f32 %v798, 1.442695
    %v800 = vpow.pop %v799
    %v801 = vadd.f32 %v800, 1.0
    %v802 = vrcp.pop %v801
    %v803 = vmul.f32 %v801, %v802
    %v804 = vsub.f32 1.0, %v803
    %v805 = vmul.f32 %v802, %v804
    %v806 = vadd.f32 %v802, %v805
    %vm807 = vweird.f32 %v801
    %vm808 = vweird.f32 %v802
    %vm809 = vmor %vm807, %vm808
    %v810 = vsel %vm809, %v802, %v806
    %v811 = vand.u32 2147483647, %v801
    %vm812 = vcmp.eq.f32.partialorder %v811, 8.507059e+37
    %v813 = vand.u32 %v801, 2147483648
    %v814 = vor.u32 1.1754944e-38, %v813
    %v815 = vsel %vm812, %v814, %v810
    %v816 = vmul.f32 1.0, %v815
    %v817 = vadd.f32 %v773, %v42
    %v818 = vmul.f32 %v794, %v817
    %v819 = vrot.slane %v203, 4
    %v821 = vadd.f32 %v819, %v818
    %v822 = vtanh.pop %v821
    %v823 = vsub.f32 %v714, %v822
    %v824 = vmul.f32 %v816, %v823
    %v825 = vadd.f32 %v822, %v824
    %826 = vmatpush.msra.mxu0 %v268
    %827 = vmatpush.msra.mxu0 %v265
    %828 = vmatpush.msra.mxu0 %v262
    %829 = vmatpush.msra.mxu0 %v259
    %830 = vmatpush.msra.mxu0 %v256
    %831 = vmatpush.msra.mxu0 %v253
    %832 = vmatpush.msra.mxu0 %v250
    %833 = vmatpush.msra.mxu0 %v247
    %834 = vmatpush.msra.mxu0 %v244
    %835 = vmatpush.msra.mxu0 %v241
    %836 = vmatpush.msra.mxu0 %v238
    %837 = vmatpush.msra.mxu0 %v235
    %838 = vmatpush.msra.mxu0 %v232
    %839 = vmatpush.msra.mxu0 %v229
    %840 = vmatpush.msra.mxu0 %v226
    %841 = vmatpush.msra.mxu0 %v223
    %842 = vmatmul.f32.gmra.mxu0 %v825
    %v843 = vpop.f32.mrf.mxu0
    %v844 = vadd.f32 0.0, %v843
    %845 = vdwg.mxu0
    %846 = vmatpush.msra.mxu0 %v269
    %847 = vmatpush.msra.mxu0 %v266
    %848 = vmatpush.msra.mxu0 %v263
    %849 = vmatpush.msra.mxu0 %v260
    %850 = vmatpush.msra.mxu0 %v257
    %851 = vmatpush.msra.mxu0 %v254
    %852 = vmatpush.msra.mxu0 %v251
    %853 = vmatpush.msra.mxu0 %v248
    %854 = vmatpush.msra.mxu0 %v245
    %855 = vmatpush.msra.mxu0 %v242
    %856 = vmatpush.msra.mxu0 %v239
    %857 = vmatpush.msra.mxu0 %v236
    %858 = vmatpush.msra.mxu0 %v233
    %859 = vmatpush.msra.mxu0 %v230
    %860 = vmatpush.msra.mxu0 %v227
    %861 = vmatpush.msra.mxu0 %v224
    %862 = vmatmul.f32.gmra.mxu0 %v825
    %v863 = vpop.f32.mrf.mxu0
    %v864 = vadd.f32 0.0, %v863
    %865 = vdwg.mxu0
    %866 = vmatpush.msra.mxu0 %v270
    %867 = vmatpush.msra.mxu0 %v267
    %868 = vmatpush.msra.mxu0 %v264
    %869 = vmatpush.msra.mxu0 %v261
    %870 = vmatpush.msra.mxu0 %v258
    %871 = vmatpush.msra.mxu0 %v255
    %872 = vmatpush.msra.mxu0 %v252
    %873 = vmatpush.msra.mxu0 %v249
    %874 = vmatpush.msra.mxu0 %v246
    %875 = vmatpush.msra.mxu0 %v243
    %876 = vmatpush.msra.mxu0 %v240
    %877 = vmatpush.msra.mxu0 %v237
    %878 = vmatpush.msra.mxu0 %v234
    %879 = vmatpush.msra.mxu0 %v231
    %880 = vmatpush.msra.mxu0 %v228
    %881 = vmatpush.msra.mxu0 %v225
    %882 = vmatmul.f32.gmra.mxu0 %v825
    %v883 = vpop.f32.mrf.mxu0
    %v884 = vadd.f32 0.0, %v883
    %885 = vdwg.mxu0
    %v886 = vadd.f32 %v199, %v844
    %v887 = vxor.u32 %v886, 2147483648
    %v888 = vmul.f32 %v887, 1.442695
    %v889 = vpow.pop %v888
    %v890 = vadd.f32 %v889, 1.0
    %v891 = vrcp.pop %v890
    %v892 = vmul.f32 %v890, %v891
    %v893 = vsub.f32 1.0, %v892
    %v894 = vmul.f32 %v891, %v893
    %v895 = vadd.f32 %v891, %v894
    %vm896 = vweird.f32 %v890
    %vm897 = vweird.f32 %v891
    %vm898 = vmor %vm896, %vm897
    %v899 = vsel %vm898, %v891, %v895
    %v900 = vand.u32 2147483647, %v890
    %vm901 = vcmp.eq.f32.partialorder %v900, 8.507059e+37
    %v902 = vand.u32 %v890, 2147483648
    %v903 = vor.u32 1.1754944e-38, %v902
    %v904 = vsel %vm901, %v903, %v899
    %v905 = vmul.f32 1.0, %v904
    %v906 = vrot.slane %v199, 2
    %v908 = vadd.f32 %v906, %v864
    %v909 = vxor.u32 %v908, 2147483648
    %v910 = vmul.f32 %v909, 1.442695
    %v911 = vpow.pop %v910
    %v912 = vadd.f32 %v911, 1.0
    %v913 = vrcp.pop %v912
    %v914 = vmul.f32 %v912, %v913
    %v915 = vsub.f32 1.0, %v914
    %v916 = vmul.f32 %v913, %v915
    %v917 = vadd.f32 %v913, %v916
    %vm918 = vweird.f32 %v912
    %vm919 = vweird.f32 %v913
    %vm920 = vmor %vm918, %vm919
    %v921 = vsel %vm920, %v913, %v917
    %v922 = vand.u32 2147483647, %v912
    %vm923 = vcmp.eq.f32.partialorder %v922, 8.507059e+37
    %v924 = vand.u32 %v912, 2147483648
    %v925 = vor.u32 1.1754944e-38, %v924
    %v926 = vsel %vm923, %v925, %v921
    %v927 = vmul.f32 1.0, %v926
    %v928 = vadd.f32 %v884, %v42
    %v929 = vmul.f32 %v905, %v928
    %v930 = vrot.slane %v199, 4
    %v932 = vadd.f32 %v930, %v929
    %v933 = vtanh.pop %v932
    %v934 = vsub.f32 %v825, %v933
    %v935 = vmul.f32 %v927, %v934
    %v936 = vadd.f32 %v933, %v935
    %937 = vmatpush.msra.mxu0 %v268
    %938 = vmatpush.msra.mxu0 %v265
    %939 = vmatpush.msra.mxu0 %v262
    %940 = vmatpush.msra.mxu0 %v259
    %941 = vmatpush.msra.mxu0 %v256
    %942 = vmatpush.msra.mxu0 %v253
    %943 = vmatpush.msra.mxu0 %v250
    %944 = vmatpush.msra.mxu0 %v247
    %945 = vmatpush.msra.mxu0 %v244
    %946 = vmatpush.msra.mxu0 %v241
    %947 = vmatpush.msra.mxu0 %v238
    %948 = vmatpush.msra.mxu0 %v235
    %949 = vmatpush.msra.mxu0 %v232
    %950 = vmatpush.msra.mxu0 %v229
    %951 = vmatpush.msra.mxu0 %v226
    %952 = vmatpush.msra.mxu0 %v223
    %953 = vmatmul.f32.gmra.mxu0 %v936
    %v954 = vpop.f32.mrf.mxu0
    %v955 = vadd.f32 0.0, %v954
    %956 = vdwg.mxu0
    %957 = vmatpush.msra.mxu0 %v269
    %958 = vmatpush.msra.mxu0 %v266
    %959 = vmatpush.msra.mxu0 %v263
    %960 = vmatpush.msra.mxu0 %v260
    %961 = vmatpush.msra.mxu0 %v257
    %962 = vmatpush.msra.mxu0 %v254
    %963 = vmatpush.msra.mxu0 %v251
    %964 = vmatpush.msra.mxu0 %v248
    %965 = vmatpush.msra.mxu0 %v245
    %966 = vmatpush.msra.mxu0 %v242
    %967 = vmatpush.msra.mxu0 %v239
    %968 = vmatpush.msra.mxu0 %v236
    %969 = vmatpush.msra.mxu0 %v233
    %970 = vmatpush.msra.mxu0 %v230
    %971 = vmatpush.msra.mxu0 %v227
    %972 = vmatpush.msra.mxu0 %v224
    %973 = vmatmul.f32.gmra.mxu0 %v936
    %v974 = vpop.f32.mrf.mxu0
    %v975 = vadd.f32 0.0, %v974
    %976 = vdwg.mxu0
    %977 = vmatpush.msra.mxu0 %v270
    %978 = vmatpush.msra.mxu0 %v267
    %979 = vmatpush.msra.mxu0 %v264
    %980 = vmatpush.msra.mxu0 %v261
    %981 = vmatpush.msra.mxu0 %v258
    %982 = vmatpush.msra.mxu0 %v255
    %983 = vmatpush.msra.mxu0 %v252
    %984 = vmatpush.msra.mxu0 %v249
    %985 = vmatpush.msra.mxu0 %v246
    %986 = vmatpush.msra.mxu0 %v243
    %987 = vmatpush.msra.mxu0 %v240
    %988 = vmatpush.msra.mxu0 %v237
    %989 = vmatpush.msra.mxu0 %v234
    %990 = vmatpush.msra.mxu0 %v231
    %991 = vmatpush.msra.mxu0 %v228
    %992 = vmatpush.msra.mxu0 %v225
    %993 = vmatmul.f32.gmra.mxu0 %v936
    %v994 = vpop.f32.mrf.mxu0
    %v995 = vadd.f32 0.0, %v994
    %996 = vdwg.mxu0
    %v997 = vadd.f32 %v195, %v955
    %v998 = vxor.u32 %v997, 2147483648
    %v999 = vmul.f32 %v998, 1.442695
    %v1000 = vpow.pop %v999
    %v1001 = vadd.f32 %v1000, 1.0
    %v1002 = vrcp.pop %v1001
    %v1003 = vmul.f32 %v1001, %v1002
    %v1004 = vsub.f32 1.0, %v1003
    %v1005 = vmul.f32 %v1002, %v1004
    %v1006 = vadd.f32 %v1002, %v1005
    %vm1007 = vweird.f32 %v1001
    %vm1008 = vweird.f32 %v1002
    %vm1009 = vmor %vm1007, %vm1008
    %v1010 = vsel %vm1009, %v1002, %v1006
    %v1011 = vand.u32 2147483647, %v1001
    %vm1012 = vcmp.eq.f32.partialorder %v1011, 8.507059e+37
    %v1013 = vand.u32 %v1001, 2147483648
    %v1014 = vor.u32 1.1754944e-38, %v1013
    %v1015 = vsel %vm1012, %v1014, %v1010
    %v1016 = vmul.f32 1.0, %v1015
    %v1017 = vrot.slane %v195, 2
    %v1019 = vadd.f32 %v1017, %v975
    %v1020 = vxor.u32 %v1019, 2147483648
    %v1021 = vmul.f32 %v1020, 1.442695
    %v1022 = vpow.pop %v1021
    %v1023 = vadd.f32 %v1022, 1.0
    %v1024 = vrcp.pop %v1023
    %v1025 = vmul.f32 %v1023, %v1024
    %v1026 = vsub.f32 1.0, %v1025
    %v1027 = vmul.f32 %v1024, %v1026
    %v1028 = vadd.f32 %v1024, %v1027
    %vm1029 = vweird.f32 %v1023
    %vm1030 = vweird.f32 %v1024
    %vm1031 = vmor %vm1029, %vm1030
    %v1032 = vsel %vm1031, %v1024, %v1028
    %v1033 = vand.u32 2147483647, %v1023
    %vm1034 = vcmp.eq.f32.partialorder %v1033, 8.507059e+37
    %v1035 = vand.u32 %v1023, 2147483648
    %v1036 = vor.u32 1.1754944e-38, %v1035
    %v1037 = vsel %vm1034, %v1036, %v1032
    %v1038 = vmul.f32 1.0, %v1037
    %v1039 = vadd.f32 %v995, %v42
    %v1040 = vmul.f32 %v1016, %v1039
    %v1041 = vrot.slane %v195, 4
    %v1043 = vadd.f32 %v1041, %v1040
    %v1044 = vtanh.pop %v1043
    %v1045 = vsub.f32 %v936, %v1044
    %v1046 = vmul.f32 %v1038, %v1045
    %v1047 = vadd.f32 %v1044, %v1046
    %1048 = vmatpush.msra.mxu0 %v268
    %1049 = vmatpush.msra.mxu0 %v265
    %1050 = vmatpush.msra.mxu0 %v262
    %1051 = vmatpush.msra.mxu0 %v259
    %1052 = vmatpush.msra.mxu0 %v256
    %1053 = vmatpush.msra.mxu0 %v253
    %1054 = vmatpush.msra.mxu0 %v250
    %1055 = vmatpush.msra.mxu0 %v247
    %1056 = vmatpush.msra.mxu0 %v244
    %1057 = vmatpush.msra.mxu0 %v241
    %1058 = vmatpush.msra.mxu0 %v238
    %1059 = vmatpush.msra.mxu0 %v235
    %1060 = vmatpush.msra.mxu0 %v232
    %1061 = vmatpush.msra.mxu0 %v229
    %1062 = vmatpush.msra.mxu0 %v226
    %1063 = vmatpush.msra.mxu0 %v223
    %1064 = vmatmul.f32.gmra.mxu0 %v1047
    %v1065 = vpop.f32.mrf.mxu0
    %v1066 = vadd.f32 0.0, %v1065
    %1067 = vdwg.mxu0
    %1068 = vmatpush.msra.mxu0 %v269
    %1069 = vmatpush.msra.mxu0 %v266
    %1070 = vmatpush.msra.mxu0 %v263
    %1071 = vmatpush.msra.mxu0 %v260
    %1072 = vmatpush.msra.mxu0 %v257
    %1073 = vmatpush.msra.mxu0 %v254
    %1074 = vmatpush.msra.mxu0 %v251
    %1075 = vmatpush.msra.mxu0 %v248
    %1076 = vmatpush.msra.mxu0 %v245
    %1077 = vmatpush.msra.mxu0 %v242
    %1078 = vmatpush.msra.mxu0 %v239
    %1079 = vmatpush.msra.mxu0 %v236
    %1080 = vmatpush.msra.mxu0 %v233
    %1081 = vmatpush.msra.mxu0 %v230
    %1082 = vmatpush.msra.mxu0 %v227
    %1083 = vmatpush.msra.mxu0 %v224
    %1084 = vmatmul.f32.gmra.mxu0 %v1047
    %v1085 = vpop.f32.mrf.mxu0
    %v1086 = vadd.f32 0.0, %v1085
    %1087 = vdwg.mxu0
    %1088 = vmatpush.msra.mxu0 %v270
    %1089 = vmatpush.msra.mxu0 %v267
    %1090 = vmatpush.msra.mxu0 %v264
    %1091 = vmatpush.msra.mxu0 %v261
    %1092 = vmatpush.msra.mxu0 %v258
    %1093 = vmatpush.msra.mxu0 %v255
    %1094 = vmatpush.msra.mxu0 %v252
    %1095 = vmatpush.msra.mxu0 %v249
    %1096 = vmatpush.msra.mxu0 %v246
    %1097 = vmatpush.msra.mxu0 %v243
    %1098 = vmatpush.msra.mxu0 %v240
    %1099 = vmatpush.msra.mxu0 %v237
    %1100 = vmatpush.msra.mxu0 %v234
    %1101 = vmatpush.msra.mxu0 %v231
    %1102 = vmatpush.msra.mxu0 %v228
    %1103 = vmatpush.msra.mxu0 %v225
    %1104 = vmatmul.f32.gmra.mxu0 %v1047
    %v1105 = vpop.f32.mrf.mxu0
    %v1106 = vadd.f32 0.0, %v1105
    %1107 = vdwg.mxu0
    %v1108 = vadd.f32 %v190, %v1066
    %v1109 = vxor.u32 %v1108, 2147483648
    %v1110 = vmul.f32 %v1109, 1.442695
    %v1111 = vpow.pop %v1110
    %v1112 = vadd.f32 %v1111, 1.0
    %v1113 = vrcp.pop %v1112
    %v1114 = vmul.f32 %v1112, %v1113
    %v1115 = vsub.f32 1.0, %v1114
    %v1116 = vmul.f32 %v1113, %v1115
    %v1117 = vadd.f32 %v1113, %v1116
    %vm1118 = vweird.f32 %v1112
    %vm1119 = vweird.f32 %v1113
    %vm1120 = vmor %vm1118, %vm1119
    %v1121 = vsel %vm1120, %v1113, %v1117
    %v1122 = vand.u32 2147483647, %v1112
    %vm1123 = vcmp.eq.f32.partialorder %v1122, 8.507059e+37
    %v1124 = vand.u32 %v1112, 2147483648
    %v1125 = vor.u32 1.1754944e-38, %v1124
    %v1126 = vsel %vm1123, %v1125, %v1121
    %v1127 = vmul.f32 1.0, %v1126
    %v1128 = vrot.slane %v190, 2
    %v1130 = vadd.f32 %v1128, %v1086
    %v1131 = vxor.u32 %v1130, 2147483648
    %v1132 = vmul.f32 %v1131, 1.442695
    %v1133 = vpow.pop %v1132
    %v1134 = vadd.f32 %v1133, 1.0
    %v1135 = vrcp.pop %v1134
    %v1136 = vmul.f32 %v1134, %v1135
    %v1137 = vsub.f32 1.0, %v1136
    %v1138 = vmul.f32 %v1135, %v1137
    %v1139 = vadd.f32 %v1135, %v1138
    %vm1140 = vweird.f32 %v1134
    %vm1141 = vweird.f32 %v1135
    %vm1142 = vmor %vm1140, %vm1141
    %v1143 = vsel %vm1142, %v1135, %v1139
    %v1144 = vand.u32 2147483647, %v1134
    %vm1145 = vcmp.eq.f32.partialorder %v1144, 8.507059e+37
    %v1146 = vand.u32 %v1134, 2147483648
    %v1147 = vor.u32 1.1754944e-38, %v1146
    %v1148 = vsel %vm1145, %v1147, %v1143
    %v1149 = vmul.f32 1.0, %v1148
    %v1150 = vadd.f32 %v1106, %v42
    %v1151 = vmul.f32 %v1127, %v1150
    %v1152 = vrot.slane %v190, 4
    %v1154 = vadd.f32 %v1152, %v1151
    %v1155 = vtanh.pop %v1154
    %v1156 = vsub.f32 %v1047, %v1155
    %v1157 = vmul.f32 %v1149, %v1156
    %v1158 = vadd.f32 %v1155, %v1157
    %v1159 = vld [vmem:[%s4] sm:$0xff]
    %v1160 = vld [vmem:[%s4 + $0x8] sm:$0xff]
    %v1161 = vld [vmem:[%s4 + $0x10] sm:$0xff]
    %v1162 = vld [vmem:[%s4 + $0x18] sm:$0xff]
    %v1163 = vld [vmem:[%s4 + $0x20] sm:$0xff]
    %v1164 = vld [vmem:[%s4 + $0x28] sm:$0xff]
    %v1165 = vld [vmem:[%s4 + $0x30] sm:$0xff]
    %v1166 = vld [vmem:[%s4 + $0x38] sm:$0xff]
    %v1167 = vld [vmem:[%s4 + $0x40] sm:$0xff]
    %v1168 = vld [vmem:[%s4 + $0x48] sm:$0xff]
    %v1169 = vld [vmem:[%s4 + $0x50] sm:$0xff]
    %v1170 = vld [vmem:[%s4 + $0x58] sm:$0xff]
    %v1171 = vld [vmem:[%s4 + $0x60] sm:$0xff]
    %v1172 = vld [vmem:[%s4 + $0x68] sm:$0xff]
    %v1173 = vld [vmem:[%s4 + $0x70] sm:$0xff]
    %v1174 = vld [vmem:[%s4 + $0x78] sm:$0xff]
    %v1175 = vperm.slane %v40, 2
    %1176 = vmatpush.msra.mxu0 %v1174
    %1177 = vmatpush.msra.mxu0 %v1173
    %1178 = vmatpush.msra.mxu0 %v1172
    %1179 = vmatpush.msra.mxu0 %v1171
    %1180 = vmatpush.msra.mxu0 %v1170
    %1181 = vmatpush.msra.mxu0 %v1169
    %1182 = vmatpush.msra.mxu0 %v1168
    %1183 = vmatpush.msra.mxu0 %v1167
    %1184 = vmatpush.msra.mxu0 %v1166
    %1185 = vmatpush.msra.mxu0 %v1165
    %1186 = vmatpush.msra.mxu0 %v1164
    %1187 = vmatpush.msra.mxu0 %v1163
    %1188 = vmatpush.msra.mxu0 %v1162
    %1189 = vmatpush.msra.mxu0 %v1161
    %1190 = vmatpush.msra.mxu0 %v1160
    %1191 = vmatpush.msra.mxu0 %v1159
    %1192 = vmatmul.f32.gmra.mxu0 %v1158
    %v1193 = vpop.f32.mrf.mxu0
    %v1194 = vadd.f32 %v1175, %v1193
    %1195 = vdwg.mxu0
    %v1196 = vmax.f32 %v1194, 0.0
    %v1197 = vld [vmem:[%s5] sm:$0xff]
    %v1198 = vld [vmem:[%s5 + $0x8] sm:$0xff]
    %v1199 = vld [vmem:[%s5 + $0x10] sm:$0xff]
    %v1200 = vld [vmem:[%s5 + $0x18] sm:$0xff]
    %v1201 = vperm.slane %v40, 3
    %vm1202 = vcmask 261120
    %v1204 = vsel %vm1202, %v1196, 0
    %1206 = vmatpush.msra.mxu0 0.0
    %1207 = vmatpush.msra.mxu0 0.0
    %1208 = vmatpush.msra.mxu0 0.0
    %1209 = vmatpush.msra.mxu0 0.0
    %1210 = vmatpush.msra.mxu0 0.0
    %1211 = vmatpush.msra.mxu0 0.0
    %1212 = vmatpush.msra.mxu0 0.0
    %1213 = vmatpush.msra.mxu0 0.0
    %1214 = vmatpush.msra.mxu0 0.0
    %1215 = vmatpush.msra.mxu0 0.0
    %1216 = vmatpush.msra.mxu0 0.0
    %1217 = vmatpush.msra.mxu0 0.0
    %1218 = vmatpush.msra.mxu0 %v1200
    %1219 = vmatpush.msra.mxu0 %v1199
    %1220 = vmatpush.msra.mxu0 %v1198
    %1221 = vmatpush.msra.mxu0 %v1197
    %1222 = vmatmul.f32.gmra.mxu0 %v1204
    %v1223 = vpop.f32.mrf.mxu0
    %v1224 = vadd.f32 %v1201, %v1223
    %1225 = vdwg.mxu0
    %vm1226 = vcmask 58368
    %1227 = vst.msk [vmem:[#allocation5] sm:$0x3] %vm1226, %v1224
    // Predicated region
    $region30: #{tpu_custom_call.1} parent=1 // pred_check
      _
    $region31: #{tpu_custom_call.1} parent=1 // pred_check_branch
      %1229 = sbr.rel (0) target = $region33
    $region32: #{tpu_custom_call.1} parent=1 // pred_region
      %1231 = vsyncadd [#allocation4], 0
      %s1233 = sshll.u32 [#allocation5], 4
      %s1234 = int_to_ptr.vmem [resolvable:$true] %s1233
      %s1235 = sshll.u32 %s6, 4
      %s1236 = int_to_ptr.hbm [resolvable:$true] %s1235
      %1238 = dma.vmem_to_hbm [thread:$0]  %s1234, 32, %s1236, [#allocation4]
    $region33: #{tpu_custom_call.1} parent=1 // pred_fallthru
      _
    // Predicated region
    $region34: #{tpu_custom_call.1} parent=1 // pred_check
      _
    $region35: #{tpu_custom_call.1} parent=1 // pred_check_branch
      %1240 = sbr.rel (0) target = $region37
    $region36: #{tpu_custom_call.1} parent=1 // pred_region
      %1242 = dma.done [#allocation4], 32
    $region37: #{tpu_custom_call.1} parent=1 // pred_fallthru
      _
    %1243 = vsyncpa [#allocation3], 1
    %1244 = vsyncpa [#allocation4], 1

</llo_original>
